<compile_context>
chip_gen: v7x
topology: tpu7x:2x2x1
jax: 0.10.0
libtpu: 0.0.40
codegen_flags: <defaults>
</compile_context>

<pallas_src>
import functools
import math
import numpy as np
import jax
import jax.numpy as jnp
from jax import lax
from jax.experimental import pallas as pl
from jax.experimental.pallas import tpu as pltpu

CH1, CH2, CH3 = 16, 32, 64
FEAT1, FEAT2 = 500, 100
LANE = 128
HALO = 8   # 8-aligned staging offset -> zero halo rows for the +-1 shifted reads


def _round_up(n, m):
    return (n + m - 1) // m * m


# ---------------- fused Pallas kernel ----------------

def _make_fused_kernel(B, L1, real_out):
    """Whole-network kernel for static batch B, input length L1 (divisible by 8)."""
    L2, L3, L4 = L1 // 2, L1 // 4, L1 // 8

    def conv_pool_relu(h, w_ref, b_ref, L, s_ref, t_ref):
        # h: (B*L, Cin) f32 value.  Conv1d(k=3, pad=1) + bias -> MaxPool1d(2) -> ReLU.
        R, _ = h.shape
        Cout = w_ref.shape[2]
        # Stage h at an aligned offset inside a zeroed buffer so the left/right
        # conv taps are plain shifted slice reads with a zero halo.
        s_ref[...] = jnp.zeros(s_ref.shape, jnp.float32)
        s_ref[pl.ds(HALO, R), :] = h
        center = jnp.dot(h, w_ref[1], preferred_element_type=jnp.float32)
        left = jnp.dot(s_ref[pl.ds(HALO - 1, R), :], w_ref[0],
                       preferred_element_type=jnp.float32)
        right = jnp.dot(s_ref[pl.ds(HALO + 1, R), :], w_ref[2],
                        preferred_element_type=jnp.float32)
        if B > 1:
            # zero the rows whose shifted read crossed an interior batch boundary
            rows = lax.broadcasted_iota(jnp.int32, (R, Cout), 0)
            bad_l = functools.reduce(jnp.logical_or,
                                     [rows == b * L for b in range(1, B)])
            bad_r = functools.reduce(jnp.logical_or,
                                     [rows == b * L - 1 for b in range(1, B)])
            left = jnp.where(bad_l, 0.0, left)
            right = jnp.where(bad_r, 0.0, right)
        t_ref[...] = center + left + right + b_ref[...]
        # MaxPool1d(2): pairs never cross batch boundaries since L is even.
        Rh = R // 2
        even = t_ref[pl.ds(0, Rh, stride=2), :]
        odd = t_ref[pl.ds(1, Rh, stride=2), :]
        return jnp.maximum(jnp.maximum(even, odd), 0.0)

    def kernel(x_ref, w1, b1, w2, b2, w3, b3,
               wf1, bf1, wf2, bf2, wf3, bf3, o_ref,
               s1, t1, s2, t2, s3, t3, p_ref):
        h = conv_pool_relu(x_ref[...], w1, b1, L1, s1, t1)    # (B*L2, 16)
        h = conv_pool_relu(h, w2, b2, L2, s2, t2)             # (B*L3, 32)
        h = conv_pool_relu(h, w3, b3, L3, s3, t3)             # (B*L4, 64)

        # fc1: contract over (position l, channel c).  wf1 is pre-permuted/padded to
        # (L4, CH3, F1P), so the torch channel-major flatten needs no runtime transpose.
        p_ref[...] = h
        F1P = wf1.shape[2]
        a1 = jnp.zeros((B, F1P), jnp.float32)
        for l in range(L4):
            a1 = a1 + jnp.dot(p_ref[pl.ds(l, B, stride=L4), :], wf1[l],
                              preferred_element_type=jnp.float32)
        a1 = jnp.maximum(a1 + bf1[...], 0.0)                              # (B, 512)
        a2 = jnp.maximum(jnp.dot(a1, wf2[...],
                                 preferred_element_type=jnp.float32) + bf2[...],
                         0.0)                                             # (B, 128)
        logits = jnp.dot(a2, wf3[...],
                         preferred_element_type=jnp.float32) + bf3[...]   # (B, OUTP)
        cols = lax.broadcasted_iota(jnp.int32, logits.shape, 1)
        logits = jnp.where(cols < real_out, logits, -1e30)   # mask lane padding
        m = jnp.max(logits, axis=-1, keepdims=True)
        e = jnp.exp(logits - m)
        o_ref[...] = (e / jnp.sum(e, axis=-1, keepdims=True)).astype(o_ref.dtype)

    return kernel


# ---------------- wrapper (glue) ----------------

def oracle_forward(x, kp, output_size):
    """x: (B, 1, L) exactly like the PyTorch forward's NCW input. kp: prepared params."""
    B, _, L = x.shape
    assert L % 8 == 0, "input_size must be divisible by 8 (three stride-2 pools)"
    L2, L3, L4 = L // 2, L // 4, L // 8
    OUTP = kp["bf3"].shape[1]
    x2d = x[:, 0, :].reshape(B * L, 1)                        # (B*L, Cin=1)

    kernel = _make_fused_kernel(B, L, output_size)
    vmem = pl.BlockSpec(memory_space=pltpu.MemorySpace.VMEM)
    out = pl.pallas_call(
        kernel,
        out_shape=jax.ShapeDtypeStruct((B, OUTP), jnp.float32),
        in_specs=[vmem] * 13,
        out_specs=vmem,
        scratch_shapes=[
            pltpu.VMEM((B * L + 2 * HALO, 1), jnp.float32),    # s1 (staged conv1 input)
            pltpu.VMEM((B * L, CH1), jnp.float32),             # t1 (conv1 acc / pool)
            pltpu.VMEM((B * L2 + 2 * HALO, CH1), jnp.float32), # s2
            pltpu.VMEM((B * L2, CH2), jnp.float32),            # t2
            pltpu.VMEM((B * L3 + 2 * HALO, CH2), jnp.float32), # s3
            pltpu.VMEM((B * L3, CH3), jnp.float32),            # t3
            pltpu.VMEM((B * L4, CH3), jnp.float32),            # p  (flattened features)
        ],
    )(x2d, kp["w1"], kp["b1"], kp["w2"], kp["b2"], kp["w3"], kp["b3"],
      kp["wf1"], kp["bf1"], kp["wf2"], kp["bf2"], kp["wf3"], kp["bf3"])
    return out[:, :output_size]


# ---------------- deterministic parameter init + kernel-side prep ----------------

def init_params(input_size, output_size, key):
    def uni(k, shape, fan_in):
        bnd = 1.0 / math.sqrt(fan_in)
        return jax.random.uniform(k, shape, jnp.float32, -bnd, bnd)

    ks = jax.random.split(key, 12)
    flat = CH3 * input_size // 8
    p = {}
    # conv weights built in torch (Cout, Cin, K) layout then transposed to (K, Cin, Cout)
    p["w1"] = jnp.transpose(uni(ks[0], (CH1, 1, 3), 1 * 3), (2, 1, 0))
    p["b1"] = uni(ks[1], (1, CH1), 1 * 3)
    p["w2"] = jnp.transpose(uni(ks[2], (CH2, CH1, 3), CH1 * 3), (2, 1, 0))
    p["b2"] = uni(ks[3], (1, CH2), CH1 * 3)
    p["w3"] = jnp.transpose(uni(ks[4], (CH3, CH2, 3), CH2 * 3), (2, 1, 0))
    p["b3"] = uni(ks[5], (1, CH3), CH2 * 3)
    # fc weights in (Fin, Fout); wf1 rows follow torch's channel-major flatten (c*L4 + l)
    p["wf1"] = uni(ks[6], (flat, FEAT1), flat)
    p["bf1"] = uni(ks[7], (1, FEAT1), flat)
    p["wf2"] = uni(ks[8], (FEAT1, FEAT2), FEAT1)
    p["bf2"] = uni(ks[9], (1, FEAT2), FEAT1)
    p["wf3"] = uni(ks[10], (FEAT2, output_size), FEAT2)
    p["bf3"] = uni(ks[11], (1, output_size), FEAT2)
    return p


def prepare_params(p, input_size, output_size):
    """One-time rearrangement for the fused kernel: fold the channel-major flatten into
    wf1 and zero-pad FC widths to lane multiples (done at init, zero runtime cost)."""
    L4 = input_size // 8
    F1P = _round_up(FEAT1, LANE)        # 512
    F2P = _round_up(FEAT2, LANE)        # 128
    OUTP = _round_up(output_size, LANE) # 128
    kp = dict(w1=p["w1"], b1=p["b1"], w2=p["w2"], b2=p["b2"], w3=p["w3"], b3=p["b3"])
    # wf1[c*L4 + l, f] -> wf1_k[l, c, f]
    wf1 = p["wf1"].reshape(CH3, L4, FEAT1).transpose(1, 0, 2)
    kp["wf1"] = jnp.pad(wf1, ((0, 0), (0, 0), (0, F1P - FEAT1)))
    kp["bf1"] = jnp.pad(p["bf1"], ((0, 0), (0, F1P - FEAT1)))
    kp["wf2"] = jnp.pad(p["wf2"], ((0, F1P - FEAT1), (0, F2P - FEAT2)))
    kp["bf2"] = jnp.pad(p["bf2"], ((0, 0), (0, F2P - FEAT2)))
    kp["wf3"] = jnp.pad(p["wf3"], ((0, F2P - FEAT2), (0, OUTP - output_size)))
    kp["bf3"] = jnp.pad(p["bf3"], ((0, 0), (0, OUTP - output_size)))
    return kp


# ---------------- pure-JAX reference (for correctness check) ----------------

def ref_forward(x, p):
    h = x  # (B, 1, L)
    for wn, bn in (("w1", "b1"), ("w2", "b2"), ("w3", "b3")):
        w = jnp.transpose(p[wn], (2, 1, 0))          # (Cout, Cin, 3)
        h = lax.conv_general_dilated(h, w, window_strides=(1,), padding=((1, 1),),
                                     dimension_numbers=("NCH", "OIH", "NCH"))
        h = h + p[bn][0][None, :, None]
        B, C, L = h.shape
        h = jnp.max(h.reshape(B, C, L // 2, 2), axis=-1)
        h = jnp.maximum(h, 0.0)
    h = h.reshape(h.shape[0], -1)
    h = jnp.maximum(h @ p["wf1"] + p["bf1"][0], 0.0)
    h = jnp.maximum(h @ p["wf2"] + p["bf2"][0], 0.0)
    return jax.nn.softmax(h @ p["wf3"] + p["bf3"][0], axis=1)


if __name__ == "__main__":
    batch, input_size, output_size = 2, 32, 10   # flat = 64 * 32 / 8 = 256
    key = jax.random.PRNGKey(0)
    kx, kparam = jax.random.split(key)
    x = jax.random.normal(kx, (batch, 1, input_size), jnp.float32)
    params = init_params(input_size, output_size, kparam)
    kprep = prepare_params(params, input_size, output_size)

    out = jax.block_until_ready(oracle_forward(x, kprep, output_size))
    ref = jax.block_until_ready(ref_forward(x, params))

    assert out.shape == (batch, output_size), out.shape
    np.testing.assert_allclose(np.asarray(out), np.asarray(ref), rtol=1e-3, atol=1e-4)
    np.testing.assert_allclose(np.asarray(out).sum(axis=1), np.ones(batch), rtol=1e-5)
    print("KERNEL_OK")
</pallas_src>

<mosaic_0001>
module attributes {stable_mosaic.version = 11 : i64} {
  func.func @kernel(%arg0: memref<64x1xf32, #tpu.memory_space<vmem>>, %arg1: memref<3x1x16xf32, #tpu.memory_space<vmem>>, %arg2: memref<1x16xf32, #tpu.memory_space<vmem>>, %arg3: memref<3x16x32xf32, #tpu.memory_space<vmem>>, %arg4: memref<1x32xf32, #tpu.memory_space<vmem>>, %arg5: memref<3x32x64xf32, #tpu.memory_space<vmem>>, %arg6: memref<1x64xf32, #tpu.memory_space<vmem>>, %arg7: memref<4x64x512xf32, #tpu.memory_space<vmem>>, %arg8: memref<1x512xf32, #tpu.memory_space<vmem>>, %arg9: memref<512x128xf32, #tpu.memory_space<vmem>>, %arg10: memref<1x128xf32, #tpu.memory_space<vmem>>, %arg11: memref<128x128xf32, #tpu.memory_space<vmem>>, %arg12: memref<1x128xf32, #tpu.memory_space<vmem>>, %arg13: memref<2x128xf32, #tpu.memory_space<vmem>>, %arg14: memref<80x1xf32, #tpu.memory_space<vmem>>, %arg15: memref<64x16xf32, #tpu.memory_space<vmem>>, %arg16: memref<48x16xf32, #tpu.memory_space<vmem>>, %arg17: memref<32x32xf32, #tpu.memory_space<vmem>>, %arg18: memref<32x32xf32, #tpu.memory_space<vmem>>, %arg19: memref<16x64xf32, #tpu.memory_space<vmem>>, %arg20: memref<8x64xf32, #tpu.memory_space<vmem>>) attributes {dimension_semantics = [], scalar_prefetch = 0 : i64, scratch_operands = 7 : i64, tpu.core_type = #tpu.core_type<tc>} {
    %c0 = arith.constant 0 : index
    %c0_0 = arith.constant 0 : index
    %0 = vector.load %arg0[%c0, %c0_0] : memref<64x1xf32, #tpu.memory_space<vmem>>, vector<64x1xf32>
    %cst = arith.constant 0.000000e+00 : f32
    %1 = vector.broadcast %cst : f32 to vector<80x1xf32>
    %c0_1 = arith.constant 0 : index
    %c0_2 = arith.constant 0 : index
    %2 = vector.load %arg14[%c0_1, %c0_2] : memref<80x1xf32, #tpu.memory_space<vmem>>, vector<80x1xf32>
    tpu.vector_store %arg14[%c0_1, %c0_2], %1 {strides = array<i32>} : memref<80x1xf32, #tpu.memory_space<vmem>>, vector<80x1xf32>,
    %c8 = arith.constant 8 : index
    %c0_3 = arith.constant 0 : index
    %3 = vector.load %arg14[%c8, %c0_3] : memref<80x1xf32, #tpu.memory_space<vmem>>, vector<64x1xf32>
    tpu.vector_store %arg14[%c8, %c0_3], %0 {strides = array<i32>} : memref<80x1xf32, #tpu.memory_space<vmem>>, vector<64x1xf32>,
    %c1 = arith.constant 1 : index
    %c0_4 = arith.constant 0 : index
    %c0_5 = arith.constant 0 : index
    %4 = vector.load %arg1[%c1, %c0_4, %c0_5] : memref<3x1x16xf32, #tpu.memory_space<vmem>>, vector<1x1x16xf32>
    %5 = vector.shape_cast %4 : vector<1x1x16xf32> to vector<1x16xf32>
    %cst_6 = arith.constant dense<0.000000e+00> : vector<64x16xf32>
    %6 = tpu.matmul %0, %5, %cst_6 {dimension_numbers = #tpu.dot_dimension_numbers<[1], [0], [0], [1], [0, 0, 1, 1], [], []>} : vector<64x1xf32>, vector<1x16xf32>, vector<64x16xf32> -> vector<64x16xf32>
    %c7 = arith.constant 7 : index
    %c0_7 = arith.constant 0 : index
    %7 = vector.load %arg14[%c7, %c0_7] : memref<80x1xf32, #tpu.memory_space<vmem>>, vector<64x1xf32>
    %c0_8 = arith.constant 0 : index
    %c0_9 = arith.constant 0 : index
    %c0_10 = arith.constant 0 : index
    %8 = vector.load %arg1[%c0_8, %c0_9, %c0_10] : memref<3x1x16xf32, #tpu.memory_space<vmem>>, vector<1x1x16xf32>
    %9 = vector.shape_cast %8 : vector<1x1x16xf32> to vector<1x16xf32>
    %cst_11 = arith.constant dense<0.000000e+00> : vector<64x16xf32>
    %10 = tpu.matmul %7, %9, %cst_11 {dimension_numbers = #tpu.dot_dimension_numbers<[1], [0], [0], [1], [0, 0, 1, 1], [], []>} : vector<64x1xf32>, vector<1x16xf32>, vector<64x16xf32> -> vector<64x16xf32>
    %c9 = arith.constant 9 : index
    %c0_12 = arith.constant 0 : index
    %11 = vector.load %arg14[%c9, %c0_12] : memref<80x1xf32, #tpu.memory_space<vmem>>, vector<64x1xf32>
    %c2 = arith.constant 2 : index
    %c0_13 = arith.constant 0 : index
    %c0_14 = arith.constant 0 : index
    %12 = vector.load %arg1[%c2, %c0_13, %c0_14] : memref<3x1x16xf32, #tpu.memory_space<vmem>>, vector<1x1x16xf32>
    %13 = vector.shape_cast %12 : vector<1x1x16xf32> to vector<1x16xf32>
    %cst_15 = arith.constant dense<0.000000e+00> : vector<64x16xf32>
    %14 = tpu.matmul %11, %13, %cst_15 {dimension_numbers = #tpu.dot_dimension_numbers<[1], [0], [0], [1], [0, 0, 1, 1], [], []>} : vector<64x1xf32>, vector<1x16xf32>, vector<64x16xf32> -> vector<64x16xf32>
    %15 = tpu.iota {dimensions = array<i32: 0>} : vector<64x16xi32>
    %c32_i32 = arith.constant 32 : i32
    %16 = vector.broadcast %c32_i32 : i32 to vector<64x16xi32>
    %17 = arith.cmpi eq, %15, %16 : vector<64x16xi32>
    %c31_i32 = arith.constant 31 : i32
    %18 = vector.broadcast %c31_i32 : i32 to vector<64x16xi32>
    %19 = arith.cmpi eq, %15, %18 : vector<64x16xi32>
    %cst_16 = arith.constant 0.000000e+00 : f32
    %20 = vector.broadcast %cst_16 : f32 to vector<64x16xf32>
    %21 = arith.select %17, %20, %10 : vector<64x16xi1>, vector<64x16xf32>
    %cst_17 = arith.constant 0.000000e+00 : f32
    %22 = vector.broadcast %cst_17 : f32 to vector<64x16xf32>
    %23 = arith.select %19, %22, %14 : vector<64x16xi1>, vector<64x16xf32>
    %24 = arith.addf %6, %21 : vector<64x16xf32>
    %25 = arith.addf %24, %23 : vector<64x16xf32>
    %c0_18 = arith.constant 0 : index
    %c0_19 = arith.constant 0 : index
    %26 = vector.load %arg2[%c0_18, %c0_19] : memref<1x16xf32, #tpu.memory_space<vmem>>, vector<1x16xf32>
    %27 = vector.broadcast %26 : vector<1x16xf32> to vector<64x16xf32>
    %28 = arith.addf %25, %27 : vector<64x16xf32>
    %c0_20 = arith.constant 0 : index
    %c0_21 = arith.constant 0 : index
    %29 = vector.load %arg15[%c0_20, %c0_21] : memref<64x16xf32, #tpu.memory_space<vmem>>, vector<64x16xf32>
    tpu.vector_store %arg15[%c0_20, %c0_21], %28 {strides = array<i32>} : memref<64x16xf32, #tpu.memory_space<vmem>>, vector<64x16xf32>,
    %c0_22 = arith.constant 0 : index
    %c0_23 = arith.constant 0 : index
    %30 = tpu.strided_load %arg15[%c0_22, %c0_23] {strides = array<i32: 2, 1>} : memref<64x16xf32, #tpu.memory_space<vmem>>, vector<32x16xf32>
    %c1_24 = arith.constant 1 : index
    %c0_25 = arith.constant 0 : index
    %31 = tpu.strided_load %arg15[%c1_24, %c0_25] {strides = array<i32: 2, 1>} : memref<64x16xf32, #tpu.memory_space<vmem>>, vector<32x16xf32>
    %32 = arith.maximumf %30, %31 : vector<32x16xf32>
    %cst_26 = arith.constant 0.000000e+00 : f32
    %33 = vector.broadcast %cst_26 : f32 to vector<32x16xf32>
    %34 = arith.maximumf %32, %33 : vector<32x16xf32>
    %cst_27 = arith.constant 0.000000e+00 : f32
    %35 = vector.broadcast %cst_27 : f32 to vector<48x16xf32>
    %c0_28 = arith.constant 0 : index
    %c0_29 = arith.constant 0 : index
    %36 = vector.load %arg16[%c0_28, %c0_29] : memref<48x16xf32, #tpu.memory_space<vmem>>, vector<48x16xf32>
    tpu.vector_store %arg16[%c0_28, %c0_29], %35 {strides = array<i32>} : memref<48x16xf32, #tpu.memory_space<vmem>>, vector<48x16xf32>,
    %c8_30 = arith.constant 8 : index
    %c0_31 = arith.constant 0 : index
    %37 = vector.load %arg16[%c8_30, %c0_31] : memref<48x16xf32, #tpu.memory_space<vmem>>, vector<32x16xf32>
    tpu.vector_store %arg16[%c8_30, %c0_31], %34 {strides = array<i32>} : memref<48x16xf32, #tpu.memory_space<vmem>>, vector<32x16xf32>,
    %c1_32 = arith.constant 1 : index
    %c0_33 = arith.constant 0 : index
    %c0_34 = arith.constant 0 : index
    %38 = vector.load %arg3[%c1_32, %c0_33, %c0_34] : memref<3x16x32xf32, #tpu.memory_space<vmem>>, vector<1x16x32xf32>
    %39 = vector.shape_cast %38 : vector<1x16x32xf32> to vector<16x32xf32>
    %cst_35 = arith.constant dense<0.000000e+00> : vector<32x32xf32>
    %40 = tpu.matmul %34, %39, %cst_35 {dimension_numbers = #tpu.dot_dimension_numbers<[1], [0], [0], [1], [0, 0, 1, 1], [], []>} : vector<32x16xf32>, vector<16x32xf32>, vector<32x32xf32> -> vector<32x32xf32>
    %c7_36 = arith.constant 7 : index
    %c0_37 = arith.constant 0 : index
    %41 = vector.load %arg16[%c7_36, %c0_37] : memref<48x16xf32, #tpu.memory_space<vmem>>, vector<32x16xf32>
    %c0_38 = arith.constant 0 : index
    %c0_39 = arith.constant 0 : index
    %c0_40 = arith.constant 0 : index
    %42 = vector.load %arg3[%c0_38, %c0_39, %c0_40] : memref<3x16x32xf32, #tpu.memory_space<vmem>>, vector<1x16x32xf32>
    %43 = vector.shape_cast %42 : vector<1x16x32xf32> to vector<16x32xf32>
    %cst_41 = arith.constant dense<0.000000e+00> : vector<32x32xf32>
    %44 = tpu.matmul %41, %43, %cst_41 {dimension_numbers = #tpu.dot_dimension_numbers<[1], [0], [0], [1], [0, 0, 1, 1], [], []>} : vector<32x16xf32>, vector<16x32xf32>, vector<32x32xf32> -> vector<32x32xf32>
    %c9_42 = arith.constant 9 : index
    %c0_43 = arith.constant 0 : index
    %45 = vector.load %arg16[%c9_42, %c0_43] : memref<48x16xf32, #tpu.memory_space<vmem>>, vector<32x16xf32>
    %c2_44 = arith.constant 2 : index
    %c0_45 = arith.constant 0 : index
    %c0_46 = arith.constant 0 : index
    %46 = vector.load %arg3[%c2_44, %c0_45, %c0_46] : memref<3x16x32xf32, #tpu.memory_space<vmem>>, vector<1x16x32xf32>
    %47 = vector.shape_cast %46 : vector<1x16x32xf32> to vector<16x32xf32>
    %cst_47 = arith.constant dense<0.000000e+00> : vector<32x32xf32>
    %48 = tpu.matmul %45, %47, %cst_47 {dimension_numbers = #tpu.dot_dimension_numbers<[1], [0], [0], [1], [0, 0, 1, 1], [], []>} : vector<32x16xf32>, vector<16x32xf32>, vector<32x32xf32> -> vector<32x32xf32>
    %49 = tpu.iota {dimensions = array<i32: 0>} : vector<32x32xi32>
    %c16_i32 = arith.constant 16 : i32
    %50 = vector.broadcast %c16_i32 : i32 to vector<32x32xi32>
    %51 = arith.cmpi eq, %49, %50 : vector<32x32xi32>
    %c15_i32 = arith.constant 15 : i32
    %52 = vector.broadcast %c15_i32 : i32 to vector<32x32xi32>
    %53 = arith.cmpi eq, %49, %52 : vector<32x32xi32>
    %cst_48 = arith.constant 0.000000e+00 : f32
    %54 = vector.broadcast %cst_48 : f32 to vector<32x32xf32>
    %55 = arith.select %51, %54, %44 : vector<32x32xi1>, vector<32x32xf32>
    %cst_49 = arith.constant 0.000000e+00 : f32
    %56 = vector.broadcast %cst_49 : f32 to vector<32x32xf32>
    %57 = arith.select %53, %56, %48 : vector<32x32xi1>, vector<32x32xf32>
    %58 = arith.addf %40, %55 : vector<32x32xf32>
    %59 = arith.addf %58, %57 : vector<32x32xf32>
    %c0_50 = arith.constant 0 : index
    %c0_51 = arith.constant 0 : index
    %60 = vector.load %arg4[%c0_50, %c0_51] : memref<1x32xf32, #tpu.memory_space<vmem>>, vector<1x32xf32>
    %61 = vector.broadcast %60 : vector<1x32xf32> to vector<32x32xf32>
    %62 = arith.addf %59, %61 : vector<32x32xf32>
    %c0_52 = arith.constant 0 : index
    %c0_53 = arith.constant 0 : index
    %63 = vector.load %arg17[%c0_52, %c0_53] : memref<32x32xf32, #tpu.memory_space<vmem>>, vector<32x32xf32>
    tpu.vector_store %arg17[%c0_52, %c0_53], %62 {strides = array<i32>} : memref<32x32xf32, #tpu.memory_space<vmem>>, vector<32x32xf32>,
    %c0_54 = arith.constant 0 : index
    %c0_55 = arith.constant 0 : index
    %64 = tpu.strided_load %arg17[%c0_54, %c0_55] {strides = array<i32: 2, 1>} : memref<32x32xf32, #tpu.memory_space<vmem>>, vector<16x32xf32>
    %c1_56 = arith.constant 1 : index
    %c0_57 = arith.constant 0 : index
    %65 = tpu.strided_load %arg17[%c1_56, %c0_57] {strides = array<i32: 2, 1>} : memref<32x32xf32, #tpu.memory_space<vmem>>, vector<16x32xf32>
    %66 = arith.maximumf %64, %65 : vector<16x32xf32>
    %cst_58 = arith.constant 0.000000e+00 : f32
    %67 = vector.broadcast %cst_58 : f32 to vector<16x32xf32>
    %68 = arith.maximumf %66, %67 : vector<16x32xf32>
    %cst_59 = arith.constant 0.000000e+00 : f32
    %69 = vector.broadcast %cst_59 : f32 to vector<32x32xf32>
    %c0_60 = arith.constant 0 : index
    %c0_61 = arith.constant 0 : index
    %70 = vector.load %arg18[%c0_60, %c0_61] : memref<32x32xf32, #tpu.memory_space<vmem>>, vector<32x32xf32>
    tpu.vector_store %arg18[%c0_60, %c0_61], %69 {strides = array<i32>} : memref<32x32xf32, #tpu.memory_space<vmem>>, vector<32x32xf32>,
    %c8_62 = arith.constant 8 : index
    %c0_63 = arith.constant 0 : index
    %71 = vector.load %arg18[%c8_62, %c0_63] : memref<32x32xf32, #tpu.memory_space<vmem>>, vector<16x32xf32>
    tpu.vector_store %arg18[%c8_62, %c0_63], %68 {strides = array<i32>} : memref<32x32xf32, #tpu.memory_space<vmem>>, vector<16x32xf32>,
    %c1_64 = arith.constant 1 : index
    %c0_65 = arith.constant 0 : index
    %c0_66 = arith.constant 0 : index
    %72 = vector.load %arg5[%c1_64, %c0_65, %c0_66] : memref<3x32x64xf32, #tpu.memory_space<vmem>>, vector<1x32x64xf32>
    %73 = vector.shape_cast %72 : vector<1x32x64xf32> to vector<32x64xf32>
    %cst_67 = arith.constant dense<0.000000e+00> : vector<16x64xf32>
    %74 = tpu.matmul %68, %73, %cst_67 {dimension_numbers = #tpu.dot_dimension_numbers<[1], [0], [0], [1], [0, 0, 1, 1], [], []>} : vector<16x32xf32>, vector<32x64xf32>, vector<16x64xf32> -> vector<16x64xf32>
    %c7_68 = arith.constant 7 : index
    %c0_69 = arith.constant 0 : index
    %75 = vector.load %arg18[%c7_68, %c0_69] : memref<32x32xf32, #tpu.memory_space<vmem>>, vector<16x32xf32>
    %c0_70 = arith.constant 0 : index
    %c0_71 = arith.constant 0 : index
    %c0_72 = arith.constant 0 : index
    %76 = vector.load %arg5[%c0_70, %c0_71, %c0_72] : memref<3x32x64xf32, #tpu.memory_space<vmem>>, vector<1x32x64xf32>
    %77 = vector.shape_cast %76 : vector<1x32x64xf32> to vector<32x64xf32>
    %cst_73 = arith.constant dense<0.000000e+00> : vector<16x64xf32>
    %78 = tpu.matmul %75, %77, %cst_73 {dimension_numbers = #tpu.dot_dimension_numbers<[1], [0], [0], [1], [0, 0, 1, 1], [], []>} : vector<16x32xf32>, vector<32x64xf32>, vector<16x64xf32> -> vector<16x64xf32>
    %c9_74 = arith.constant 9 : index
    %c0_75 = arith.constant 0 : index
    %79 = vector.load %arg18[%c9_74, %c0_75] : memref<32x32xf32, #tpu.memory_space<vmem>>, vector<16x32xf32>
    %c2_76 = arith.constant 2 : index
    %c0_77 = arith.constant 0 : index
    %c0_78 = arith.constant 0 : index
    %80 = vector.load %arg5[%c2_76, %c0_77, %c0_78] : memref<3x32x64xf32, #tpu.memory_space<vmem>>, vector<1x32x64xf32>
    %81 = vector.shape_cast %80 : vector<1x32x64xf32> to vector<32x64xf32>
    %cst_79 = arith.constant dense<0.000000e+00> : vector<16x64xf32>
    %82 = tpu.matmul %79, %81, %cst_79 {dimension_numbers = #tpu.dot_dimension_numbers<[1], [0], [0], [1], [0, 0, 1, 1], [], []>} : vector<16x32xf32>, vector<32x64xf32>, vector<16x64xf32> -> vector<16x64xf32>
    %83 = tpu.iota {dimensions = array<i32: 0>} : vector<16x64xi32>
    %c8_i32 = arith.constant 8 : i32
    %84 = vector.broadcast %c8_i32 : i32 to vector<16x64xi32>
    %85 = arith.cmpi eq, %83, %84 : vector<16x64xi32>
    %c7_i32 = arith.constant 7 : i32
    %86 = vector.broadcast %c7_i32 : i32 to vector<16x64xi32>
    %87 = arith.cmpi eq, %83, %86 : vector<16x64xi32>
    %cst_80 = arith.constant 0.000000e+00 : f32
    %88 = vector.broadcast %cst_80 : f32 to vector<16x64xf32>
    %89 = arith.select %85, %88, %78 : vector<16x64xi1>, vector<16x64xf32>
    %cst_81 = arith.constant 0.000000e+00 : f32
    %90 = vector.broadcast %cst_81 : f32 to vector<16x64xf32>
    %91 = arith.select %87, %90, %82 : vector<16x64xi1>, vector<16x64xf32>
    %92 = arith.addf %74, %89 : vector<16x64xf32>
    %93 = arith.addf %92, %91 : vector<16x64xf32>
    %c0_82 = arith.constant 0 : index
    %c0_83 = arith.constant 0 : index
    %94 = vector.load %arg6[%c0_82, %c0_83] : memref<1x64xf32, #tpu.memory_space<vmem>>, vector<1x64xf32>
    %95 = vector.broadcast %94 : vector<1x64xf32> to vector<16x64xf32>
    %96 = arith.addf %93, %95 : vector<16x64xf32>
    %c0_84 = arith.constant 0 : index
    %c0_85 = arith.constant 0 : index
    %97 = vector.load %arg19[%c0_84, %c0_85] : memref<16x64xf32, #tpu.memory_space<vmem>>, vector<16x64xf32>
    tpu.vector_store %arg19[%c0_84, %c0_85], %96 {strides = array<i32>} : memref<16x64xf32, #tpu.memory_space<vmem>>, vector<16x64xf32>,
    %c0_86 = arith.constant 0 : index
    %c0_87 = arith.constant 0 : index
    %98 = tpu.strided_load %arg19[%c0_86, %c0_87] {strides = array<i32: 2, 1>} : memref<16x64xf32, #tpu.memory_space<vmem>>, vector<8x64xf32>
    %c1_88 = arith.constant 1 : index
    %c0_89 = arith.constant 0 : index
    %99 = tpu.strided_load %arg19[%c1_88, %c0_89] {strides = array<i32: 2, 1>} : memref<16x64xf32, #tpu.memory_space<vmem>>, vector<8x64xf32>
    %100 = arith.maximumf %98, %99 : vector<8x64xf32>
    %cst_90 = arith.constant 0.000000e+00 : f32
    %101 = vector.broadcast %cst_90 : f32 to vector<8x64xf32>
    %102 = arith.maximumf %100, %101 : vector<8x64xf32>
    %c0_91 = arith.constant 0 : index
    %c0_92 = arith.constant 0 : index
    %103 = vector.load %arg20[%c0_91, %c0_92] : memref<8x64xf32, #tpu.memory_space<vmem>>, vector<8x64xf32>
    tpu.vector_store %arg20[%c0_91, %c0_92], %102 {strides = array<i32>} : memref<8x64xf32, #tpu.memory_space<vmem>>, vector<8x64xf32>,
    %cst_93 = arith.constant 0.000000e+00 : f32
    %104 = vector.broadcast %cst_93 : f32 to vector<2x512xf32>
    %c0_94 = arith.constant 0 : index
    %c0_95 = arith.constant 0 : index
    %105 = tpu.strided_load %arg20[%c0_94, %c0_95] {strides = array<i32: 4, 1>} : memref<8x64xf32, #tpu.memory_space<vmem>>, vector<2x64xf32>
    %c0_96 = arith.constant 0 : index
    %c0_97 = arith.constant 0 : index
    %c0_98 = arith.constant 0 : index
    %106 = vector.load %arg7[%c0_96, %c0_97, %c0_98] : memref<4x64x512xf32, #tpu.memory_space<vmem>>, vector<1x64x512xf32>
    %107 = vector.shape_cast %106 : vector<1x64x512xf32> to vector<64x512xf32>
    %cst_99 = arith.constant dense<0.000000e+00> : vector<2x512xf32>
    %108 = tpu.matmul %105, %107, %cst_99 {dimension_numbers = #tpu.dot_dimension_numbers<[1], [0], [0], [1], [0, 0, 1, 1], [], []>} : vector<2x64xf32>, vector<64x512xf32>, vector<2x512xf32> -> vector<2x512xf32>
    %109 = arith.addf %104, %108 : vector<2x512xf32>
    %c1_100 = arith.constant 1 : index
    %c0_101 = arith.constant 0 : index
    %110 = tpu.strided_load %arg20[%c1_100, %c0_101] {strides = array<i32: 4, 1>} : memref<8x64xf32, #tpu.memory_space<vmem>>, vector<2x64xf32>
    %c1_102 = arith.constant 1 : index
    %c0_103 = arith.constant 0 : index
    %c0_104 = arith.constant 0 : index
    %111 = vector.load %arg7[%c1_102, %c0_103, %c0_104] : memref<4x64x512xf32, #tpu.memory_space<vmem>>, vector<1x64x512xf32>
    %112 = vector.shape_cast %111 : vector<1x64x512xf32> to vector<64x512xf32>
    %cst_105 = arith.constant dense<0.000000e+00> : vector<2x512xf32>
    %113 = tpu.matmul %110, %112, %cst_105 {dimension_numbers = #tpu.dot_dimension_numbers<[1], [0], [0], [1], [0, 0, 1, 1], [], []>} : vector<2x64xf32>, vector<64x512xf32>, vector<2x512xf32> -> vector<2x512xf32>
    %114 = arith.addf %109, %113 : vector<2x512xf32>
    %c2_106 = arith.constant 2 : index
    %c0_107 = arith.constant 0 : index
    %115 = tpu.strided_load %arg20[%c2_106, %c0_107] {strides = array<i32: 4, 1>} : memref<8x64xf32, #tpu.memory_space<vmem>>, vector<2x64xf32>
    %c2_108 = arith.constant 2 : index
    %c0_109 = arith.constant 0 : index
    %c0_110 = arith.constant 0 : index
    %116 = vector.load %arg7[%c2_108, %c0_109, %c0_110] : memref<4x64x512xf32, #tpu.memory_space<vmem>>, vector<1x64x512xf32>
    %117 = vector.shape_cast %116 : vector<1x64x512xf32> to vector<64x512xf32>
    %cst_111 = arith.constant dense<0.000000e+00> : vector<2x512xf32>
    %118 = tpu.matmul %115, %117, %cst_111 {dimension_numbers = #tpu.dot_dimension_numbers<[1], [0], [0], [1], [0, 0, 1, 1], [], []>} : vector<2x64xf32>, vector<64x512xf32>, vector<2x512xf32> -> vector<2x512xf32>
    %119 = arith.addf %114, %118 : vector<2x512xf32>
    %c3 = arith.constant 3 : index
    %c0_112 = arith.constant 0 : index
    %120 = tpu.strided_load %arg20[%c3, %c0_112] {strides = array<i32: 4, 1>} : memref<8x64xf32, #tpu.memory_space<vmem>>, vector<2x64xf32>
    %c3_113 = arith.constant 3 : index
    %c0_114 = arith.constant 0 : index
    %c0_115 = arith.constant 0 : index
    %121 = vector.load %arg7[%c3_113, %c0_114, %c0_115] : memref<4x64x512xf32, #tpu.memory_space<vmem>>, vector<1x64x512xf32>
    %122 = vector.shape_cast %121 : vector<1x64x512xf32> to vector<64x512xf32>
    %cst_116 = arith.constant dense<0.000000e+00> : vector<2x512xf32>
    %123 = tpu.matmul %120, %122, %cst_116 {dimension_numbers = #tpu.dot_dimension_numbers<[1], [0], [0], [1], [0, 0, 1, 1], [], []>} : vector<2x64xf32>, vector<64x512xf32>, vector<2x512xf32> -> vector<2x512xf32>
    %124 = arith.addf %119, %123 : vector<2x512xf32>
    %c0_117 = arith.constant 0 : index
    %c0_118 = arith.constant 0 : index
    %125 = vector.load %arg8[%c0_117, %c0_118] : memref<1x512xf32, #tpu.memory_space<vmem>>, vector<1x512xf32>
    %126 = vector.broadcast %125 : vector<1x512xf32> to vector<2x512xf32>
    %127 = arith.addf %124, %126 : vector<2x512xf32>
    %cst_119 = arith.constant 0.000000e+00 : f32
    %128 = vector.broadcast %cst_119 : f32 to vector<2x512xf32>
    %129 = arith.maximumf %127, %128 : vector<2x512xf32>
    %c0_120 = arith.constant 0 : index
    %c0_121 = arith.constant 0 : index
    %130 = vector.load %arg9[%c0_120, %c0_121] : memref<512x128xf32, #tpu.memory_space<vmem>>, vector<512x128xf32>
    %cst_122 = arith.constant dense<0.000000e+00> : vector<2x128xf32>
    %131 = tpu.matmul %129, %130, %cst_122 {dimension_numbers = #tpu.dot_dimension_numbers<[1], [0], [0], [1], [0, 0, 1, 1], [], []>} : vector<2x512xf32>, vector<512x128xf32>, vector<2x128xf32> -> vector<2x128xf32>
    %c0_123 = arith.constant 0 : index
    %c0_124 = arith.constant 0 : index
    %132 = vector.load %arg10[%c0_123, %c0_124] : memref<1x128xf32, #tpu.memory_space<vmem>>, vector<1x128xf32>
    %133 = vector.broadcast %132 : vector<1x128xf32> to vector<2x128xf32>
    %134 = arith.addf %131, %133 : vector<2x128xf32>
    %cst_125 = arith.constant 0.000000e+00 : f32
    %135 = vector.broadcast %cst_125 : f32 to vector<2x128xf32>
    %136 = arith.maximumf %134, %135 : vector<2x128xf32>
    %c0_126 = arith.constant 0 : index
    %c0_127 = arith.constant 0 : index
    %137 = vector.load %arg11[%c0_126, %c0_127] : memref<128x128xf32, #tpu.memory_space<vmem>>, vector<128x128xf32>
    %cst_128 = arith.constant dense<0.000000e+00> : vector<2x128xf32>
    %138 = tpu.matmul %136, %137, %cst_128 {dimension_numbers = #tpu.dot_dimension_numbers<[1], [0], [0], [1], [0, 0, 1, 1], [], []>} : vector<2x128xf32>, vector<128x128xf32>, vector<2x128xf32> -> vector<2x128xf32>
    %c0_129 = arith.constant 0 : index
    %c0_130 = arith.constant 0 : index
    %139 = vector.load %arg12[%c0_129, %c0_130] : memref<1x128xf32, #tpu.memory_space<vmem>>, vector<1x128xf32>
    %140 = vector.broadcast %139 : vector<1x128xf32> to vector<2x128xf32>
    %141 = arith.addf %138, %140 : vector<2x128xf32>
    %142 = tpu.iota {dimensions = array<i32: 1>} : vector<2x128xi32>
    %c10_i32 = arith.constant 10 : i32
    %143 = vector.broadcast %c10_i32 : i32 to vector<2x128xi32>
    %144 = arith.cmpi slt, %142, %143 : vector<2x128xi32>
    %cst_131 = arith.constant -1.000000e+30 : f32
    %145 = vector.broadcast %cst_131 : f32 to vector<2x128xf32>
    %146 = arith.select %144, %141, %145 : vector<2x128xi1>, vector<2x128xf32>
    %cst_132 = arith.constant dense<0xFF800000> : vector<2xf32>
    %147 = vector.multi_reduction <maximumf>, %146, %cst_132 [1] : vector<2x128xf32> to vector<2xf32>
    %148 = vector.shape_cast %147 : vector<2xf32> to vector<2x1xf32>
    %149 = vector.broadcast %148 : vector<2x1xf32> to vector<2x128xf32>
    %150 = arith.subf %146, %149 : vector<2x128xf32>
    %151 = math.exp %150 : vector<2x128xf32>
    %cst_133 = arith.constant dense<0.000000e+00> : vector<2xf32>
    %152 = vector.multi_reduction <add>, %151, %cst_133 [1] : vector<2x128xf32> to vector<2xf32>
    %153 = vector.shape_cast %152 : vector<2xf32> to vector<2x1xf32>
    %154 = vector.broadcast %153 : vector<2x1xf32> to vector<2x128xf32>
    %155 = arith.divf %151, %154 : vector<2x128xf32>
    %c0_134 = arith.constant 0 : index
    %c0_135 = arith.constant 0 : index
    %156 = vector.load %arg13[%c0_134, %c0_135] : memref<2x128xf32, #tpu.memory_space<vmem>>, vector<2x128xf32>
    tpu.vector_store %arg13[%c0_134, %c0_135], %155 {strides = array<i32>} : memref<2x128xf32, #tpu.memory_space<vmem>>, vector<2x128xf32>,
    return
  }
}

</mosaic_0001>

<llo_original>
// kernel: tpu_custom_call.1
$region0: #{tpu_custom_call.1}
  #allocation0 [shape = 'u32[]', space=smem, size = 0x4, offset = 0x4, fixed_abs, tag = 'smem constant byte address 0x4 - core index']
  #allocation1 [shape = 'u32[144,128]{1,0:T(1,128)}', space=vmem, size = 0x12000, scoped, tag = 'internal scratch']
  #allocation2 [shape = 'f32[80,1]{1,0:T(8,128)}', space=vmem, size = 0xa000, scoped, tag = 'scratch operand']
  #allocation3 [shape = 'f32[64,16]{1,0:T(8,128)}', space=vmem, size = 0x8000, scoped, tag = 'scratch operand']
  #allocation4 [shape = 'f32[48,16]{1,0:T(8,128)}', space=vmem, size = 0x6000, scoped, tag = 'scratch operand']
  #allocation5 [shape = 'f32[32,32]{1,0:T(8,128)}', space=vmem, size = 0x4000, scoped, tag = 'scratch operand']
  #allocation6 [shape = 'f32[32,32]{1,0:T(8,128)}', space=vmem, size = 0x4000, scoped, tag = 'scratch operand']
  #allocation7 [shape = 'f32[16,64]{1,0:T(8,128)}', space=vmem, size = 0x2000, scoped, tag = 'scratch operand']
  #allocation8 [shape = 'f32[8,64]{1,0:T(8,128)}', space=vmem, size = 0x1000, scoped, tag = 'scratch operand']
  %s0 = inlined_call_operand.vmem [shape: f32[64,1], index: 0, kind: input, shape index: {}]
  %s1 = inlined_call_operand.vmem [shape: f32[3,1,16], index: 1, kind: input, shape index: {}]
  %s2 = inlined_call_operand.vmem [shape: f32[1,16], index: 2, kind: input, shape index: {}]
  %s3 = inlined_call_operand.vmem [shape: f32[3,16,32], index: 3, kind: input, shape index: {}]
  %s4 = inlined_call_operand.vmem [shape: f32[1,32], index: 4, kind: input, shape index: {}]
  %s5 = inlined_call_operand.hbm [shape: f32[3,32,64], index: 5, kind: input, shape index: {}]
  %s6 = inlined_call_operand.vmem [shape: f32[1,64], index: 6, kind: input, shape index: {}]
  %s7 = inlined_call_operand.hbm [shape: f32[4,64,512], index: 7, kind: input, shape index: {}]
  %s8 = inlined_call_operand.vmem [shape: f32[1,512], index: 8, kind: input, shape index: {}]
  %s9 = inlined_call_operand.hbm [shape: f32[512,128], index: 9, kind: input, shape index: {}]
  %s10 = inlined_call_operand.vmem [shape: f32[1,128], index: 10, kind: input, shape index: {}]
  %s11 = inlined_call_operand.hbm [shape: f32[128,128], index: 11, kind: input, shape index: {}]
  %s12 = inlined_call_operand.vmem [shape: f32[1,128], index: 12, kind: input, shape index: {}]
  %s13 = inlined_call_operand.hbm [shape: f32[2,128], index: 13, kind: output, shape index: {}]
  %s14 = sld [smem:[#allocation0]]
  $region78: #{tpu_custom_call.1} parent=0
    _
  %s16 = ssub.s32 1, %s14
  %s17 = scalar_select 0, %s16, %s14
  $region1: #{tpu_custom_call.1} parent=0
    #allocation9 [shape = 'u8[49152]{0}', space=vmem, size = 0xc000, scoped, tag = 'input window, operand 5, single buffered']
    #allocation10 [shape = 's32[1]{0}', space=sflag, size = 0x4, scoped, tag = 'scoped memory for tpu_custom_call.1']
    #allocation11 [shape = 's32[1]{0}', space=sflag, size = 0x4, scoped, tag = 'scoped memory for tpu_custom_call.1']
    #allocation12 [shape = 'u8[524288]{0}', space=vmem, size = 0x80000, scoped, tag = 'input window, operand 7, single buffered']
    #allocation13 [shape = 's32[1]{0}', space=sflag, size = 0x4, scoped, tag = 'scoped memory for tpu_custom_call.1']
    #allocation14 [shape = 'u8[262144]{0}', space=vmem, size = 0x40000, scoped, tag = 'input window, operand 9, single buffered']
    #allocation15 [shape = 'u8[65536]{0}', space=vmem, size = 0x10000, scoped, tag = 'input window, operand 11, single buffered']
    #allocation16 [shape = 's32[1]{0}', space=sflag, size = 0x4, scoped, tag = 'scoped memory for tpu_custom_call.1']
    #allocation17 [shape = 'u8[1024]{0}', space=vmem, size = 0x400, scoped, tag = 'output window, operand 0, single buffered']
    %18 = vsyncpa [#allocation10], 0
    %19 = vsyncpa [#allocation13], 0
    %20 = vsyncpa [#allocation16], 0
    %21 = vsyncpa [#allocation11], 0
    // Predicated region
    $region2: #{tpu_custom_call.1} parent=1 // pred_check
      _
    $region3: #{tpu_custom_call.1} parent=1 // pred_check_branch
      %23 = sbr.rel (0) target = $region5
    $region4: #{tpu_custom_call.1} parent=1 // pred_region
      _
    $region5: #{tpu_custom_call.1} parent=1 // pred_fallthru
      _
    // Predicated region
    $region6: #{tpu_custom_call.1} parent=1 // pred_check
      _
    $region7: #{tpu_custom_call.1} parent=1 // pred_check_branch
      %25 = sbr.rel (0) target = $region9
    $region8: #{tpu_custom_call.1} parent=1 // pred_region
      _
    $region9: #{tpu_custom_call.1} parent=1 // pred_fallthru
      _
    // Predicated region
    $region10: #{tpu_custom_call.1} parent=1 // pred_check
      _
    $region11: #{tpu_custom_call.1} parent=1 // pred_check_branch
      %27 = sbr.rel (0) target = $region13
    $region12: #{tpu_custom_call.1} parent=1 // pred_region
      _
    $region13: #{tpu_custom_call.1} parent=1 // pred_fallthru
      _
    // Predicated region
    $region14: #{tpu_custom_call.1} parent=1 // pred_check
      _
    $region15: #{tpu_custom_call.1} parent=1 // pred_check_branch
      %29 = sbr.rel (0) target = $region17
    $region16: #{tpu_custom_call.1} parent=1 // pred_region
      _
    $region17: #{tpu_custom_call.1} parent=1 // pred_fallthru
      _
    // Predicated region
    $region18: #{tpu_custom_call.1} parent=1 // pred_check
      _
    $region19: #{tpu_custom_call.1} parent=1 // pred_check_branch
      %31 = sbr.rel (0) target = $region21
    $region20: #{tpu_custom_call.1} parent=1 // pred_region
      _
    $region21: #{tpu_custom_call.1} parent=1 // pred_fallthru
      _
    // Predicated region
    $region22: #{tpu_custom_call.1} parent=1 // pred_check
      _
    $region23: #{tpu_custom_call.1} parent=1 // pred_check_branch
      %33 = sbr.rel (0) target = $region25
    $region24: #{tpu_custom_call.1} parent=1 // pred_region
      %s35 = ssub.s32 1536, 1536
      %36 = vsyncadd [#allocation10], %s35
      %s37 = sshll.u32 [#allocation9], 4
      %s38 = int_to_ptr.vmem [resolvable:$true] %s37
      %43 = dma.hbm_to_vmem [thread:$0]  %s5, 1536, %s38, [#allocation10], 128, 128, 8
    $region25: #{tpu_custom_call.1} parent=1 // pred_fallthru
      _
    // Predicated region
    $region26: #{tpu_custom_call.1} parent=1 // pred_check
      _
    $region27: #{tpu_custom_call.1} parent=1 // pred_check_branch
      %45 = sbr.rel (0) target = $region29
    $region28: #{tpu_custom_call.1} parent=1 // pred_region
      _
    $region29: #{tpu_custom_call.1} parent=1 // pred_fallthru
      _
    // Predicated region
    $region30: #{tpu_custom_call.1} parent=1 // pred_check
      _
    $region31: #{tpu_custom_call.1} parent=1 // pred_check_branch
      %47 = sbr.rel (0) target = $region33
    $region32: #{tpu_custom_call.1} parent=1 // pred_region
      %s49 = ssub.s32 16384, 16384
      %50 = vsyncadd [#allocation13], %s49
      %s51 = sshll.u32 [#allocation12], 4
      %s52 = int_to_ptr.vmem [resolvable:$true] %s51
      %57 = dma.hbm_to_vmem [thread:$0]  %s7, 16384, %s52, [#allocation13], 512, 512, 32
    $region33: #{tpu_custom_call.1} parent=1 // pred_fallthru
      _
    // Predicated region
    $region34: #{tpu_custom_call.1} parent=1 // pred_check
      _
    $region35: #{tpu_custom_call.1} parent=1 // pred_check_branch
      %59 = sbr.rel (0) target = $region37
    $region36: #{tpu_custom_call.1} parent=1 // pred_region
      _
    $region37: #{tpu_custom_call.1} parent=1 // pred_fallthru
      _
    // Predicated region
    $region38: #{tpu_custom_call.1} parent=1 // pred_check
      _
    $region39: #{tpu_custom_call.1} parent=1 // pred_check_branch
      %61 = sbr.rel (0) target = $region41
    $region40: #{tpu_custom_call.1} parent=1 // pred_region
      %s63 = ssub.s32 8192, 8192
      %64 = vsyncadd [#allocation13], %s63
      %s65 = sshll.u32 [#allocation14], 4
      %s66 = int_to_ptr.vmem [resolvable:$true] %s65
      %71 = dma.hbm_to_vmem [thread:$0]  %s9, 8192, %s66, [#allocation13], 128, 128, 8
    $region41: #{tpu_custom_call.1} parent=1 // pred_fallthru
      _
    // Predicated region
    $region42: #{tpu_custom_call.1} parent=1 // pred_check
      _
    $region43: #{tpu_custom_call.1} parent=1 // pred_check_branch
      %73 = sbr.rel (0) target = $region45
    $region44: #{tpu_custom_call.1} parent=1 // pred_region
      _
    $region45: #{tpu_custom_call.1} parent=1 // pred_fallthru
      _
    // Predicated region
    $region46: #{tpu_custom_call.1} parent=1 // pred_check
      _
    $region47: #{tpu_custom_call.1} parent=1 // pred_check_branch
      %75 = sbr.rel (0) target = $region49
    $region48: #{tpu_custom_call.1} parent=1 // pred_region
      %s77 = ssub.s32 2048, 2048
      %78 = vsyncadd [#allocation16], %s77
      %s79 = sshll.u32 [#allocation15], 4
      %s80 = int_to_ptr.vmem [resolvable:$true] %s79
      %85 = dma.hbm_to_vmem [thread:$0]  %s11, 2048, %s80, [#allocation16], 128, 128, 8
    $region49: #{tpu_custom_call.1} parent=1 // pred_fallthru
      _
    // Predicated region
    $region50: #{tpu_custom_call.1} parent=1 // pred_check
      _
    $region51: #{tpu_custom_call.1} parent=1 // pred_check_branch
      %87 = sbr.rel (0) target = $region53
    $region52: #{tpu_custom_call.1} parent=1 // pred_region
      _
    $region53: #{tpu_custom_call.1} parent=1 // pred_fallthru
      _
    // Predicated region
    $region54: #{tpu_custom_call.1} parent=1 // pred_check
      _
    $region55: #{tpu_custom_call.1} parent=1 // pred_check_branch
      %89 = sbr.rel (0) target = $region57
    $region56: #{tpu_custom_call.1} parent=1 // pred_region
      %90 = dma.done [#allocation10], 1536
    $region57: #{tpu_custom_call.1} parent=1 // pred_fallthru
      _
    // Predicated region
    $region58: #{tpu_custom_call.1} parent=1 // pred_check
      _
    $region59: #{tpu_custom_call.1} parent=1 // pred_check_branch
      %92 = sbr.rel (0) target = $region61
    $region60: #{tpu_custom_call.1} parent=1 // pred_region
      %93 = dma.done [#allocation13], 16384
    $region61: #{tpu_custom_call.1} parent=1 // pred_fallthru
      _
    // Predicated region
    $region62: #{tpu_custom_call.1} parent=1 // pred_check
      _
    $region63: #{tpu_custom_call.1} parent=1 // pred_check_branch
      %95 = sbr.rel (0) target = $region65
    $region64: #{tpu_custom_call.1} parent=1 // pred_region
      %96 = dma.done [#allocation13], 8192
    $region65: #{tpu_custom_call.1} parent=1 // pred_fallthru
      _
    // Predicated region
    $region66: #{tpu_custom_call.1} parent=1 // pred_check
      _
    $region67: #{tpu_custom_call.1} parent=1 // pred_check_branch
      %98 = sbr.rel (0) target = $region69
    $region68: #{tpu_custom_call.1} parent=1 // pred_region
      %99 = dma.done [#allocation16], 2048
    $region69: #{tpu_custom_call.1} parent=1 // pred_fallthru
      _
    %v100 = vld [vmem:[%s0] sm:$0xff]
    %v101 = vld [vmem:[%s0 + $0x8] sm:$0xff]
    %v102 = vld [vmem:[%s0 + $0x10] sm:$0xff]
    %v103 = vld [vmem:[%s0 + $0x18] sm:$0xff]
    %v104 = vld [vmem:[%s0 + $0x20] sm:$0xff]
    %v105 = vld [vmem:[%s0 + $0x28] sm:$0xff]
    %v106 = vld [vmem:[%s0 + $0x30] sm:$0xff]
    %v107 = vld [vmem:[%s0 + $0x38] sm:$0xff]
    %vm108 = vcmask 7168
    %109 = vst.msk [vmem:[#allocation2] sm:$0xff] %vm108, 0.0
    %110 = vst.msk [vmem:[#allocation2 + $0x8] sm:$0xff] %vm108, 0.0
    %111 = vst.msk [vmem:[#allocation2 + $0x10] sm:$0xff] %vm108, 0.0
    %112 = vst.msk [vmem:[#allocation2 + $0x18] sm:$0xff] %vm108, 0.0
    %113 = vst.msk [vmem:[#allocation2 + $0x20] sm:$0xff] %vm108, 0.0
    %114 = vst.msk [vmem:[#allocation2 + $0x28] sm:$0xff] %vm108, 0.0
    %115 = vst.msk [vmem:[#allocation2 + $0x30] sm:$0xff] %vm108, 0.0
    %116 = vst.msk [vmem:[#allocation2 + $0x38] sm:$0xff] %vm108, 0.0
    %117 = vst.msk [vmem:[#allocation2 + $0x40] sm:$0xff] %vm108, 0.0
    %118 = vst.msk [vmem:[#allocation2 + $0x48] sm:$0xff] %vm108, 0.0
    %119 = vst.msk [vmem:[#allocation2 + $0x8] sm:$0xff] %vm108, %v100
    %120 = vst.msk [vmem:[#allocation2 + $0x10] sm:$0xff] %vm108, %v101
    %121 = vst.msk [vmem:[#allocation2 + $0x18] sm:$0xff] %vm108, %v102
    %122 = vst.msk [vmem:[#allocation2 + $0x20] sm:$0xff] %vm108, %v103
    %123 = vst.msk [vmem:[#allocation2 + $0x28] sm:$0xff] %vm108, %v104
    %124 = vst.msk [vmem:[#allocation2 + $0x30] sm:$0xff] %vm108, %v105
    %125 = vst.msk [vmem:[#allocation2 + $0x38] sm:$0xff] %vm108, %v106
    %126 = vst.msk [vmem:[#allocation2 + $0x40] sm:$0xff] %vm108, %v107
    %s127 = scalar_lea.vmem %s1, 1
    %v128 = vld [vmem:[%s127] sm:$0x1]
    %v129 = vld [vmem:[#allocation2 + $0x7] sm:$0xff]
    %v130 = vld [vmem:[#allocation2 + $0xf] sm:$0xff]
    %v131 = vld [vmem:[#allocation2 + $0x17] sm:$0xff]
    %v132 = vld [vmem:[#allocation2 + $0x1f] sm:$0xff]
    %v133 = vld [vmem:[#allocation2 + $0x27] sm:$0xff]
    %v134 = vld [vmem:[#allocation2 + $0x2f] sm:$0xff]
    %v135 = vld [vmem:[#allocation2 + $0x37] sm:$0xff]
    %v136 = vld [vmem:[#allocation2 + $0x3f] sm:$0xff]
    %v137 = vld [vmem:[%s1] sm:$0x1]
    %v139 = vsel %vm108, %v129, 0
    %v142 = vsel %vm108, %v130, 0
    %v145 = vsel %vm108, %v131, 0
    %v148 = vsel %vm108, %v132, 0
    %v151 = vsel %vm108, %v133, 0
    %v154 = vsel %vm108, %v134, 0
    %v157 = vsel %vm108, %v135, 0
    %v160 = vsel %vm108, %v136, 0
    %vm162 = vcmask 1040384
    %v164 = vsel %vm162, %v137, 0
    %166 = vmatprep.subr.mxu0 0.0
    %167 = vmatpush1.msra.mxu0 %v164
    %168 = vmatprep.subr.mxu0 0.0
    %169 = vmatpush1.msra.mxu0 0.0
    %170 = vmatprep.subr.mxu0 0.0
    %171 = vmatpush1.msra.mxu0 0.0
    %172 = vmatprep.subr.mxu0 0.0
    %173 = vmatpush1.msra.mxu0 0.0
    %174 = vmatprep.subr.mxu0 0.0
    %175 = vmatpush1.msra.mxu0 0.0
    %176 = vmatprep.subr.mxu0 0.0
    %177 = vmatpush1.msra.mxu0 0.0
    %178 = vmatprep.subr.mxu0 0.0
    %179 = vmatpush1.msra.mxu0 0.0
    %180 = vmatprep.subr.mxu0 0.0
    %181 = vmatpush1.msra.mxu0 0.0
    %182 = vmatprep.subr.mxu0 0.0
    %183 = vmatpush1.msra.mxu0 0.0
    %184 = vmatprep.subr.mxu0 0.0
    %185 = vmatpush1.msra.mxu0 0.0
    %186 = vmatprep.subr.mxu0 0.0
    %187 = vmatpush1.msra.mxu0 0.0
    %188 = vmatprep.subr.mxu0 0.0
    %189 = vmatpush1.msra.mxu0 0.0
    %190 = vmatprep.subr.mxu0 0.0
    %191 = vmatpush1.msra.mxu0 0.0
    %192 = vmatprep.subr.mxu0 0.0
    %193 = vmatpush1.msra.mxu0 0.0
    %194 = vmatprep.subr.mxu0 0.0
    %195 = vmatpush1.msra.mxu0 0.0
    %196 = vmatprep.subr.mxu0 0.0
    %197 = vmatpush1.msra.mxu0 0.0
    %198 = vmatprep.subr.mxu0 0.0
    %199 = vmatpush1.msra.mxu0 0.0
    %200 = vmatprep.subr.mxu0 0.0
    %201 = vmatpush1.msra.mxu0 0.0
    %202 = vmatprep.subr.mxu0 0.0
    %203 = vmatpush1.msra.mxu0 0.0
    %204 = vmatprep.subr.mxu0 0.0
    %205 = vmatpush1.msra.mxu0 0.0
    %206 = vmatprep.subr.mxu0 0.0
    %207 = vmatpush1.msra.mxu0 0.0
    %208 = vmatprep.subr.mxu0 0.0
    %209 = vmatpush1.msra.mxu0 0.0
    %210 = vmatprep.subr.mxu0 0.0
    %211 = vmatpush1.msra.mxu0 0.0
    %212 = vmatprep.subr.mxu0 0.0
    %213 = vmatpush1.msra.mxu0 0.0
    %214 = vmatprep.subr.mxu0 0.0
    %215 = vmatpush1.msra.mxu0 0.0
    %216 = vmatprep.subr.mxu0 0.0
    %217 = vmatpush1.msra.mxu0 0.0
    %218 = vmatprep.subr.mxu0 0.0
    %219 = vmatpush1.msra.mxu0 0.0
    %220 = vmatprep.subr.mxu0 0.0
    %221 = vmatpush1.msra.mxu0 0.0
    %222 = vmatprep.subr.mxu0 0.0
    %223 = vmatpush1.msra.mxu0 0.0
    %224 = vmatprep.subr.mxu0 0.0
    %225 = vmatpush1.msra.mxu0 0.0
    %226 = vmatprep.subr.mxu0 0.0
    %227 = vmatpush1.msra.mxu0 0.0
    %228 = vmatprep.subr.mxu0 0.0
    %229 = vmatpush1.msra.mxu0 0.0
    %230 = vmatprep.mubr.f32.mxu0 0.0
    %231 = vmatmul.mubr.f32.gmra.mrb[0].mxu0 %v139
    %v232 = vpop.f32.mrb[0].mxu0
    %v233 = vadd.f32 0.0, %v232
    %v234 = vpop.f32.mrb[0].mxu0
    %235 = vmatprep.mubr.f32.mxu0 0.0
    %236 = vmatmul.mubr.f32.gmra.mrb[0].mxu0 %v142
    %v237 = vpop.f32.mrb[0].mxu0
    %v238 = vadd.f32 0.0, %v237
    %v239 = vpop.f32.mrb[0].mxu0
    %240 = vmatprep.mubr.f32.mxu0 0.0
    %241 = vmatmul.mubr.f32.gmra.mrb[0].mxu0 %v145
    %v242 = vpop.f32.mrb[0].mxu0
    %v243 = vadd.f32 0.0, %v242
    %v244 = vpop.f32.mrb[0].mxu0
    %245 = vmatprep.mubr.f32.mxu0 0.0
    %246 = vmatmul.mubr.f32.gmra.mrb[0].mxu0 %v148
    %v247 = vpop.f32.mrb[0].mxu0
    %v248 = vadd.f32 0.0, %v247
    %v249 = vpop.f32.mrb[0].mxu0
    %250 = vmatprep.mubr.f32.mxu0 0.0
    %251 = vmatmul.mubr.f32.gmra.mrb[0].mxu0 %v151
    %v252 = vpop.f32.mrb[0].mxu0
    %v253 = vadd.f32 0.0, %v252
    %v254 = vpop.f32.mrb[0].mxu0
    %255 = vmatprep.mubr.f32.mxu0 0.0
    %256 = vmatmul.mubr.f32.gmra.mrb[0].mxu0 %v154
    %v257 = vpop.f32.mrb[0].mxu0
    %v258 = vadd.f32 0.0, %v257
    %v259 = vpop.f32.mrb[0].mxu0
    %260 = vmatprep.mubr.f32.mxu0 0.0
    %261 = vmatmul.mubr.f32.gmra.mrb[0].mxu0 %v157
    %v262 = vpop.f32.mrb[0].mxu0
    %v263 = vadd.f32 0.0, %v262
    %v264 = vpop.f32.mrb[0].mxu0
    %265 = vmatprep.mubr.f32.mxu0 0.0
    %266 = vmatmul.mubr.f32.gmra.mrb[0].mxu0 %v160
    %v267 = vpop.f32.mrb[0].mxu0
    %v268 = vadd.f32 0.0, %v267
    %v269 = vpop.f32.mrb[0].mxu0
    %270 = vdwg.mxu0
    %v271 = vld [vmem:[#allocation2 + $0x9] sm:$0xff]
    %v272 = vld [vmem:[#allocation2 + $0x11] sm:$0xff]
    %v273 = vld [vmem:[#allocation2 + $0x19] sm:$0xff]
    %v274 = vld [vmem:[#allocation2 + $0x21] sm:$0xff]
    %v275 = vld [vmem:[#allocation2 + $0x29] sm:$0xff]
    %v276 = vld [vmem:[#allocation2 + $0x31] sm:$0xff]
    %v277 = vld [vmem:[#allocation2 + $0x39] sm:$0xff]
    %v278 = vld [vmem:[#allocation2 + $0x41] sm:$0xff]
    %s279 = scalar_lea.vmem %s1, 2
    %v280 = vld [vmem:[%s279] sm:$0x1]
    %v282 = vsel %vm108, %v271, 0
    %v285 = vsel %vm108, %v272, 0
    %v288 = vsel %vm108, %v273, 0
    %v291 = vsel %vm108, %v274, 0
    %v294 = vsel %vm108, %v275, 0
    %v297 = vsel %vm108, %v276, 0
    %v300 = vsel %vm108, %v277, 0
    %v303 = vsel %vm108, %v278, 0
    %v306 = vsel %vm162, %v280, 0
    %308 = vmatprep.subr.mxu0 0.0
    %309 = vmatpush1.msra.mxu0 %v306
    %310 = vmatprep.subr.mxu0 0.0
    %311 = vmatpush1.msra.mxu0 0.0
    %312 = vmatprep.subr.mxu0 0.0
    %313 = vmatpush1.msra.mxu0 0.0
    %314 = vmatprep.subr.mxu0 0.0
    %315 = vmatpush1.msra.mxu0 0.0
    %316 = vmatprep.subr.mxu0 0.0
    %317 = vmatpush1.msra.mxu0 0.0
    %318 = vmatprep.subr.mxu0 0.0
    %319 = vmatpush1.msra.mxu0 0.0
    %320 = vmatprep.subr.mxu0 0.0
    %321 = vmatpush1.msra.mxu0 0.0
    %322 = vmatprep.subr.mxu0 0.0
    %323 = vmatpush1.msra.mxu0 0.0
    %324 = vmatprep.subr.mxu0 0.0
    %325 = vmatpush1.msra.mxu0 0.0
    %326 = vmatprep.subr.mxu0 0.0
    %327 = vmatpush1.msra.mxu0 0.0
    %328 = vmatprep.subr.mxu0 0.0
    %329 = vmatpush1.msra.mxu0 0.0
    %330 = vmatprep.subr.mxu0 0.0
    %331 = vmatpush1.msra.mxu0 0.0
    %332 = vmatprep.subr.mxu0 0.0
    %333 = vmatpush1.msra.mxu0 0.0
    %334 = vmatprep.subr.mxu0 0.0
    %335 = vmatpush1.msra.mxu0 0.0
    %336 = vmatprep.subr.mxu0 0.0
    %337 = vmatpush1.msra.mxu0 0.0
    %338 = vmatprep.subr.mxu0 0.0
    %339 = vmatpush1.msra.mxu0 0.0
    %340 = vmatprep.subr.mxu0 0.0
    %341 = vmatpush1.msra.mxu0 0.0
    %342 = vmatprep.subr.mxu0 0.0
    %343 = vmatpush1.msra.mxu0 0.0
    %344 = vmatprep.subr.mxu0 0.0
    %345 = vmatpush1.msra.mxu0 0.0
    %346 = vmatprep.subr.mxu0 0.0
    %347 = vmatpush1.msra.mxu0 0.0
    %348 = vmatprep.subr.mxu0 0.0
    %349 = vmatpush1.msra.mxu0 0.0
    %350 = vmatprep.subr.mxu0 0.0
    %351 = vmatpush1.msra.mxu0 0.0
    %352 = vmatprep.subr.mxu0 0.0
    %353 = vmatpush1.msra.mxu0 0.0
    %354 = vmatprep.subr.mxu0 0.0
    %355 = vmatpush1.msra.mxu0 0.0
    %356 = vmatprep.subr.mxu0 0.0
    %357 = vmatpush1.msra.mxu0 0.0
    %358 = vmatprep.subr.mxu0 0.0
    %359 = vmatpush1.msra.mxu0 0.0
    %360 = vmatprep.subr.mxu0 0.0
    %361 = vmatpush1.msra.mxu0 0.0
    %362 = vmatprep.subr.mxu0 0.0
    %363 = vmatpush1.msra.mxu0 0.0
    %364 = vmatprep.subr.mxu0 0.0
    %365 = vmatpush1.msra.mxu0 0.0
    %366 = vmatprep.subr.mxu0 0.0
    %367 = vmatpush1.msra.mxu0 0.0
    %368 = vmatprep.subr.mxu0 0.0
    %369 = vmatpush1.msra.mxu0 0.0
    %370 = vmatprep.subr.mxu0 0.0
    %371 = vmatpush1.msra.mxu0 0.0
    %372 = vmatprep.mubr.f32.mxu0 0.0
    %373 = vmatmul.mubr.f32.gmra.mrb[0].mxu0 %v282
    %v374 = vpop.f32.mrb[0].mxu0
    %v375 = vadd.f32 0.0, %v374
    %v376 = vpop.f32.mrb[0].mxu0
    %377 = vmatprep.mubr.f32.mxu0 0.0
    %378 = vmatmul.mubr.f32.gmra.mrb[0].mxu0 %v285
    %v379 = vpop.f32.mrb[0].mxu0
    %v380 = vadd.f32 0.0, %v379
    %v381 = vpop.f32.mrb[0].mxu0
    %382 = vmatprep.mubr.f32.mxu0 0.0
    %383 = vmatmul.mubr.f32.gmra.mrb[0].mxu0 %v288
    %v384 = vpop.f32.mrb[0].mxu0
    %v385 = vadd.f32 0.0, %v384
    %v386 = vpop.f32.mrb[0].mxu0
    %387 = vmatprep.mubr.f32.mxu0 0.0
    %388 = vmatmul.mubr.f32.gmra.mrb[0].mxu0 %v291
    %v389 = vpop.f32.mrb[0].mxu0
    %v390 = vadd.f32 0.0, %v389
    %v391 = vpop.f32.mrb[0].mxu0
    %392 = vmatprep.mubr.f32.mxu0 0.0
    %393 = vmatmul.mubr.f32.gmra.mrb[0].mxu0 %v294
    %v394 = vpop.f32.mrb[0].mxu0
    %v395 = vadd.f32 0.0, %v394
    %v396 = vpop.f32.mrb[0].mxu0
    %397 = vmatprep.mubr.f32.mxu0 0.0
    %398 = vmatmul.mubr.f32.gmra.mrb[0].mxu0 %v297
    %v399 = vpop.f32.mrb[0].mxu0
    %v400 = vadd.f32 0.0, %v399
    %v401 = vpop.f32.mrb[0].mxu0
    %402 = vmatprep.mubr.f32.mxu0 0.0
    %403 = vmatmul.mubr.f32.gmra.mrb[0].mxu0 %v300
    %v404 = vpop.f32.mrb[0].mxu0
    %v405 = vadd.f32 0.0, %v404
    %v406 = vpop.f32.mrb[0].mxu0
    %407 = vmatprep.mubr.f32.mxu0 0.0
    %408 = vmatmul.mubr.f32.gmra.mrb[0].mxu0 %v303
    %v409 = vpop.f32.mrb[0].mxu0
    %v410 = vadd.f32 0.0, %v409
    %v411 = vpop.f32.mrb[0].mxu0
    %412 = vdwg.mxu0
    %v413 = vlaneseq
    %v414 = vshrl.u32 %v413, 7
    %v415 = vadd.s32 %v414, 8
    %v416 = vadd.s32 %v414, 16
    %v417 = vadd.s32 %v414, 24
    %v418 = vadd.s32 %v414, 32
    %v419 = vadd.s32 %v414, 40
    %v420 = vadd.s32 %v414, 48
    %v421 = vadd.s32 %v414, 56
    %vm422 = vcmp.eq.s32.totalorder %v414, 32
    %vm423 = vcmp.eq.s32.totalorder %v415, 32
    %vm424 = vcmp.eq.s32.totalorder %v416, 32
    %vm425 = vcmp.eq.s32.totalorder %v417, 32
    %vm426 = vcmp.eq.s32.totalorder %v418, 32
    %vm427 = vcmp.eq.s32.totalorder %v419, 32
    %vm428 = vcmp.eq.s32.totalorder %v420, 32
    %vm429 = vcmp.eq.s32.totalorder %v421, 32
    %vm430 = vcmp.eq.s32.totalorder %v414, 31
    %vm431 = vcmp.eq.s32.totalorder %v415, 31
    %vm432 = vcmp.eq.s32.totalorder %v416, 31
    %vm433 = vcmp.eq.s32.totalorder %v417, 31
    %vm434 = vcmp.eq.s32.totalorder %v418, 31
    %vm435 = vcmp.eq.s32.totalorder %v419, 31
    %vm436 = vcmp.eq.s32.totalorder %v420, 31
    %vm437 = vcmp.eq.s32.totalorder %v421, 31
    %v438 = vsel %vm422, 0.0, %v233
    %v439 = vsel %vm423, 0.0, %v238
    %v440 = vsel %vm424, 0.0, %v243
    %v441 = vsel %vm425, 0.0, %v248
    %v442 = vsel %vm426, 0.0, %v253
    %v443 = vsel %vm427, 0.0, %v258
    %v444 = vsel %vm428, 0.0, %v263
    %v445 = vsel %vm429, 0.0, %v268
    %v446 = vsel %vm430, 0.0, %v375
    %v447 = vsel %vm431, 0.0, %v380
    %v448 = vsel %vm432, 0.0, %v385
    %v449 = vsel %vm433, 0.0, %v390
    %v450 = vsel %vm434, 0.0, %v395
    %v451 = vsel %vm435, 0.0, %v400
    %v452 = vsel %vm436, 0.0, %v405
    %v453 = vsel %vm437, 0.0, %v410
    %v455 = vsel %vm108, %v100, 0
    %v458 = vsel %vm108, %v101, 0
    %v461 = vsel %vm108, %v102, 0
    %v464 = vsel %vm108, %v103, 0
    %v467 = vsel %vm108, %v104, 0
    %v470 = vsel %vm108, %v105, 0
    %v473 = vsel %vm108, %v106, 0
    %v476 = vsel %vm108, %v107, 0
    %v479 = vsel %vm162, %v128, 0
    %481 = vmatprep.subr.mxu0 0.0
    %482 = vmatpush1.msra.mxu0 %v479
    %483 = vmatprep.subr.mxu0 0.0
    %484 = vmatpush1.msra.mxu0 0.0
    %485 = vmatprep.subr.mxu0 0.0
    %486 = vmatpush1.msra.mxu0 0.0
    %487 = vmatprep.subr.mxu0 0.0
    %488 = vmatpush1.msra.mxu0 0.0
    %489 = vmatprep.subr.mxu0 0.0
    %490 = vmatpush1.msra.mxu0 0.0
    %491 = vmatprep.subr.mxu0 0.0
    %492 = vmatpush1.msra.mxu0 0.0
    %493 = vmatprep.subr.mxu0 0.0
    %494 = vmatpush1.msra.mxu0 0.0
    %495 = vmatprep.subr.mxu0 0.0
    %496 = vmatpush1.msra.mxu0 0.0
    %497 = vmatprep.subr.mxu0 0.0
    %498 = vmatpush1.msra.mxu0 0.0
    %499 = vmatprep.subr.mxu0 0.0
    %500 = vmatpush1.msra.mxu0 0.0
    %501 = vmatprep.subr.mxu0 0.0
    %502 = vmatpush1.msra.mxu0 0.0
    %503 = vmatprep.subr.mxu0 0.0
    %504 = vmatpush1.msra.mxu0 0.0
    %505 = vmatprep.subr.mxu0 0.0
    %506 = vmatpush1.msra.mxu0 0.0
    %507 = vmatprep.subr.mxu0 0.0
    %508 = vmatpush1.msra.mxu0 0.0
    %509 = vmatprep.subr.mxu0 0.0
    %510 = vmatpush1.msra.mxu0 0.0
    %511 = vmatprep.subr.mxu0 0.0
    %512 = vmatpush1.msra.mxu0 0.0
    %513 = vmatprep.subr.mxu0 0.0
    %514 = vmatpush1.msra.mxu0 0.0
    %515 = vmatprep.subr.mxu0 0.0
    %516 = vmatpush1.msra.mxu0 0.0
    %517 = vmatprep.subr.mxu0 0.0
    %518 = vmatpush1.msra.mxu0 0.0
    %519 = vmatprep.subr.mxu0 0.0
    %520 = vmatpush1.msra.mxu0 0.0
    %521 = vmatprep.subr.mxu0 0.0
    %522 = vmatpush1.msra.mxu0 0.0
    %523 = vmatprep.subr.mxu0 0.0
    %524 = vmatpush1.msra.mxu0 0.0
    %525 = vmatprep.subr.mxu0 0.0
    %526 = vmatpush1.msra.mxu0 0.0
    %527 = vmatprep.subr.mxu0 0.0
    %528 = vmatpush1.msra.mxu0 0.0
    %529 = vmatprep.subr.mxu0 0.0
    %530 = vmatpush1.msra.mxu0 0.0
    %531 = vmatprep.subr.mxu0 0.0
    %532 = vmatpush1.msra.mxu0 0.0
    %533 = vmatprep.subr.mxu0 0.0
    %534 = vmatpush1.msra.mxu0 0.0
    %535 = vmatprep.subr.mxu0 0.0
    %536 = vmatpush1.msra.mxu0 0.0
    %537 = vmatprep.subr.mxu0 0.0
    %538 = vmatpush1.msra.mxu0 0.0
    %539 = vmatprep.subr.mxu0 0.0
    %540 = vmatpush1.msra.mxu0 0.0
    %541 = vmatprep.subr.mxu0 0.0
    %542 = vmatpush1.msra.mxu0 0.0
    %543 = vmatprep.subr.mxu0 0.0
    %544 = vmatpush1.msra.mxu0 0.0
    %545 = vmatprep.mubr.f32.mxu0 0.0
    %546 = vmatmul.mubr.f32.gmra.mrb[0].mxu0 %v455
    %v547 = vpop.f32.mrb[0].mxu0
    %v548 = vadd.f32 %v438, %v547
    %v549 = vpop.f32.mrb[0].mxu0
    %550 = vmatprep.mubr.f32.mxu0 0.0
    %551 = vmatmul.mubr.f32.gmra.mrb[0].mxu0 %v458
    %v552 = vpop.f32.mrb[0].mxu0
    %v553 = vadd.f32 %v439, %v552
    %v554 = vpop.f32.mrb[0].mxu0
    %555 = vmatprep.mubr.f32.mxu0 0.0
    %556 = vmatmul.mubr.f32.gmra.mrb[0].mxu0 %v461
    %v557 = vpop.f32.mrb[0].mxu0
    %v558 = vadd.f32 %v440, %v557
    %v559 = vpop.f32.mrb[0].mxu0
    %560 = vmatprep.mubr.f32.mxu0 0.0
    %561 = vmatmul.mubr.f32.gmra.mrb[0].mxu0 %v464
    %v562 = vpop.f32.mrb[0].mxu0
    %v563 = vadd.f32 %v441, %v562
    %v564 = vpop.f32.mrb[0].mxu0
    %565 = vmatprep.mubr.f32.mxu0 0.0
    %566 = vmatmul.mubr.f32.gmra.mrb[0].mxu0 %v467
    %v567 = vpop.f32.mrb[0].mxu0
    %v568 = vadd.f32 %v442, %v567
    %v569 = vpop.f32.mrb[0].mxu0
    %570 = vmatprep.mubr.f32.mxu0 0.0
    %571 = vmatmul.mubr.f32.gmra.mrb[0].mxu0 %v470
    %v572 = vpop.f32.mrb[0].mxu0
    %v573 = vadd.f32 %v443, %v572
    %v574 = vpop.f32.mrb[0].mxu0
    %575 = vmatprep.mubr.f32.mxu0 0.0
    %576 = vmatmul.mubr.f32.gmra.mrb[0].mxu0 %v473
    %v577 = vpop.f32.mrb[0].mxu0
    %v578 = vadd.f32 %v444, %v577
    %v579 = vpop.f32.mrb[0].mxu0
    %580 = vmatprep.mubr.f32.mxu0 0.0
    %581 = vmatmul.mubr.f32.gmra.mrb[0].mxu0 %v476
    %v582 = vpop.f32.mrb[0].mxu0
    %v583 = vadd.f32 %v445, %v582
    %v584 = vpop.f32.mrb[0].mxu0
    %585 = vdwg.mxu0
    %v586 = vadd.f32 %v548, %v446
    %v587 = vadd.f32 %v553, %v447
    %v588 = vadd.f32 %v558, %v448
    %v589 = vadd.f32 %v563, %v449
    %v590 = vadd.f32 %v568, %v450
    %v591 = vadd.f32 %v573, %v451
    %v592 = vadd.f32 %v578, %v452
    %v593 = vadd.f32 %v583, %v453
    %v594 = vld [vmem:[%s2] sm:$0x1]
    %v596 = vlaneseq
    %v597 = vshrl.u32 %v596, 7
    %v598 = vsub.s32 0, %v597
    %v599 = vrot.slane %v594, %v598
    %v601 = vadd.f32 %v586, %v599
    %v602 = vadd.f32 %v587, %v599
    %v603 = vadd.f32 %v588, %v599
    %v604 = vadd.f32 %v589, %v599
    %v605 = vadd.f32 %v590, %v599
    %v606 = vadd.f32 %v591, %v599
    %v607 = vadd.f32 %v592, %v599
    %v608 = vadd.f32 %v593, %v599
    %vm609 = vcmask 130048
    %610 = vst.msk [vmem:[#allocation3] sm:$0xff] %vm609, %v601
    %611 = vst.msk [vmem:[#allocation3 + $0x8] sm:$0xff] %vm609, %v602
    %612 = vst.msk [vmem:[#allocation3 + $0x10] sm:$0xff] %vm609, %v603
    %613 = vst.msk [vmem:[#allocation3 + $0x18] sm:$0xff] %vm609, %v604
    %614 = vst.msk [vmem:[#allocation3 + $0x20] sm:$0xff] %vm609, %v605
    %615 = vst.msk [vmem:[#allocation3 + $0x28] sm:$0xff] %vm609, %v606
    %616 = vst.msk [vmem:[#allocation3 + $0x30] sm:$0xff] %vm609, %v607
    %617 = vst.msk [vmem:[#allocation3 + $0x38] sm:$0xff] %vm609, %v608
    %v618 = vld [vmem:[#allocation3] ss:$2 sm:$0xff]
    %s619 = scalar_lea.vmem [#allocation3], 16
    %v620 = vld [vmem:[%s619] ss:$2 sm:$0xff]
    %s621 = scalar_lea.vmem [#allocation3], 32
    %v622 = vld [vmem:[%s621] ss:$2 sm:$0xff]
    %s623 = scalar_lea.vmem [#allocation3], 48
    %v624 = vld [vmem:[%s623] ss:$2 sm:$0xff]
    %s625 = scalar_lea.vmem [#allocation3], 1
    %v626 = vld [vmem:[%s625] ss:$2 sm:$0xff]
    %s627 = scalar_lea.vmem [#allocation3], 17
    %v628 = vld [vmem:[%s627] ss:$2 sm:$0xff]
    %s629 = scalar_lea.vmem [#allocation3], 33
    %v630 = vld [vmem:[%s629] ss:$2 sm:$0xff]
    %s631 = scalar_lea.vmem [#allocation3], 49
    %v632 = vld [vmem:[%s631] ss:$2 sm:$0xff]
    %v633 = vmax.f32 %v618, %v626
    %v634 = vmax.f32 %v620, %v628
    %v635 = vmax.f32 %v622, %v630
    %v636 = vmax.f32 %v624, %v632
    %v637 = vmax.f32 %v633, 0.0
    %v638 = vmax.f32 %v634, 0.0
    %v639 = vmax.f32 %v635, 0.0
    %v640 = vmax.f32 %v636, 0.0
    %641 = vst.msk [vmem:[#allocation4] sm:$0xff] %vm609, 0.0
    %642 = vst.msk [vmem:[#allocation4 + $0x8] sm:$0xff] %vm609, 0.0
    %643 = vst.msk [vmem:[#allocation4 + $0x10] sm:$0xff] %vm609, 0.0
    %644 = vst.msk [vmem:[#allocation4 + $0x18] sm:$0xff] %vm609, 0.0
    %645 = vst.msk [vmem:[#allocation4 + $0x20] sm:$0xff] %vm609, 0.0
    %646 = vst.msk [vmem:[#allocation4 + $0x28] sm:$0xff] %vm609, 0.0
    %647 = vst.msk [vmem:[#allocation4 + $0x8] sm:$0xff] %vm609, %v637
    %648 = vst.msk [vmem:[#allocation4 + $0x10] sm:$0xff] %vm609, %v638
    %649 = vst.msk [vmem:[#allocation4 + $0x18] sm:$0xff] %vm609, %v639
    %650 = vst.msk [vmem:[#allocation4 + $0x20] sm:$0xff] %vm609, %v640
    %s651 = scalar_lea.vmem %s3, 16
    %v652 = vld [vmem:[%s651] sm:$0xff]
    %v653 = vld [vmem:[%s651 + $0x8] sm:$0xff]
    %v654 = vld [vmem:[#allocation4 + $0x7] sm:$0xff]
    %v655 = vld [vmem:[#allocation4 + $0xf] sm:$0xff]
    %v656 = vld [vmem:[#allocation4 + $0x17] sm:$0xff]
    %v657 = vld [vmem:[#allocation4 + $0x1f] sm:$0xff]
    %v658 = vld [vmem:[%s3] sm:$0xff]
    %v659 = vld [vmem:[%s3 + $0x8] sm:$0xff]
    %v661 = vsel %vm609, %v654, 0
    %v664 = vsel %vm609, %v655, 0
    %v667 = vsel %vm609, %v656, 0
    %v670 = vsel %vm609, %v657, 0
    %672 = vmatprep.subr.mxu0 0.0
    %673 = vmatpush1.msra.mxu0 %v658
    %674 = vmatprep.subr.mxu0 0.0
    %675 = vmatpush1.msra.mxu0 %v659
    %676 = vmatprep.subr.mxu0 0.0
    %677 = vmatpush1.msra.mxu0 0.0
    %678 = vmatprep.subr.mxu0 0.0
    %679 = vmatpush1.msra.mxu0 0.0
    %680 = vmatprep.subr.mxu0 0.0
    %681 = vmatpush1.msra.mxu0 0.0
    %682 = vmatprep.subr.mxu0 0.0
    %683 = vmatpush1.msra.mxu0 0.0
    %684 = vmatprep.subr.mxu0 0.0
    %685 = vmatpush1.msra.mxu0 0.0
    %686 = vmatprep.subr.mxu0 0.0
    %687 = vmatpush1.msra.mxu0 0.0
    %688 = vmatprep.subr.mxu0 0.0
    %689 = vmatpush1.msra.mxu0 0.0
    %690 = vmatprep.subr.mxu0 0.0
    %691 = vmatpush1.msra.mxu0 0.0
    %692 = vmatprep.subr.mxu0 0.0
    %693 = vmatpush1.msra.mxu0 0.0
    %694 = vmatprep.subr.mxu0 0.0
    %695 = vmatpush1.msra.mxu0 0.0
    %696 = vmatprep.subr.mxu0 0.0
    %697 = vmatpush1.msra.mxu0 0.0
    %698 = vmatprep.subr.mxu0 0.0
    %699 = vmatpush1.msra.mxu0 0.0
    %700 = vmatprep.subr.mxu0 0.0
    %701 = vmatpush1.msra.mxu0 0.0
    %702 = vmatprep.subr.mxu0 0.0
    %703 = vmatpush1.msra.mxu0 0.0
    %704 = vmatprep.subr.mxu0 0.0
    %705 = vmatpush1.msra.mxu0 0.0
    %706 = vmatprep.subr.mxu0 0.0
    %707 = vmatpush1.msra.mxu0 0.0
    %708 = vmatprep.subr.mxu0 0.0
    %709 = vmatpush1.msra.mxu0 0.0
    %710 = vmatprep.subr.mxu0 0.0
    %711 = vmatpush1.msra.mxu0 0.0
    %712 = vmatprep.subr.mxu0 0.0
    %713 = vmatpush1.msra.mxu0 0.0
    %714 = vmatprep.subr.mxu0 0.0
    %715 = vmatpush1.msra.mxu0 0.0
    %716 = vmatprep.subr.mxu0 0.0
    %717 = vmatpush1.msra.mxu0 0.0
    %718 = vmatprep.subr.mxu0 0.0
    %719 = vmatpush1.msra.mxu0 0.0
    %720 = vmatprep.subr.mxu0 0.0
    %721 = vmatpush1.msra.mxu0 0.0
    %722 = vmatprep.subr.mxu0 0.0
    %723 = vmatpush1.msra.mxu0 0.0
    %724 = vmatprep.subr.mxu0 0.0
    %725 = vmatpush1.msra.mxu0 0.0
    %726 = vmatprep.subr.mxu0 0.0
    %727 = vmatpush1.msra.mxu0 0.0
    %728 = vmatprep.subr.mxu0 0.0
    %729 = vmatpush1.msra.mxu0 0.0
    %730 = vmatprep.subr.mxu0 0.0
    %731 = vmatpush1.msra.mxu0 0.0
    %732 = vmatprep.subr.mxu0 0.0
    %733 = vmatpush1.msra.mxu0 0.0
    %734 = vmatprep.subr.mxu0 0.0
    %735 = vmatpush1.msra.mxu0 0.0
    %736 = vmatprep.mubr.f32.mxu0 0.0
    %737 = vmatmul.mubr.f32.gmra.mrb[0].mxu0 %v661
    %v738 = vpop.f32.mrb[0].mxu0
    %v739 = vadd.f32 0.0, %v738
    %v740 = vpop.f32.mrb[0].mxu0
    %741 = vmatprep.mubr.f32.mxu0 0.0
    %742 = vmatmul.mubr.f32.gmra.mrb[0].mxu0 %v664
    %v743 = vpop.f32.mrb[0].mxu0
    %v744 = vadd.f32 0.0, %v743
    %v745 = vpop.f32.mrb[0].mxu0
    %746 = vmatprep.mubr.f32.mxu0 0.0
    %747 = vmatmul.mubr.f32.gmra.mrb[0].mxu0 %v667
    %v748 = vpop.f32.mrb[0].mxu0
    %v749 = vadd.f32 0.0, %v748
    %v750 = vpop.f32.mrb[0].mxu0
    %751 = vmatprep.mubr.f32.mxu0 0.0
    %752 = vmatmul.mubr.f32.gmra.mrb[0].mxu0 %v670
    %v753 = vpop.f32.mrb[0].mxu0
    %v754 = vadd.f32 0.0, %v753
    %v755 = vpop.f32.mrb[0].mxu0
    %756 = vdwg.mxu0
    %v757 = vld [vmem:[#allocation4 + $0x9] sm:$0xff]
    %v758 = vld [vmem:[#allocation4 + $0x11] sm:$0xff]
    %v759 = vld [vmem:[#allocation4 + $0x19] sm:$0xff]
    %v760 = vld [vmem:[#allocation4 + $0x21] sm:$0xff]
    %s761 = scalar_lea.vmem %s3, 32
    %v762 = vld [vmem:[%s761] sm:$0xff]
    %v763 = vld [vmem:[%s761 + $0x8] sm:$0xff]
    %v765 = vsel %vm609, %v757, 0
    %v768 = vsel %vm609, %v758, 0
    %v771 = vsel %vm609, %v759, 0
    %v774 = vsel %vm609, %v760, 0
    %776 = vmatprep.subr.mxu0 0.0
    %777 = vmatpush1.msra.mxu0 %v762
    %778 = vmatprep.subr.mxu0 0.0
    %779 = vmatpush1.msra.mxu0 %v763
    %780 = vmatprep.subr.mxu0 0.0
    %781 = vmatpush1.msra.mxu0 0.0
    %782 = vmatprep.subr.mxu0 0.0
    %783 = vmatpush1.msra.mxu0 0.0
    %784 = vmatprep.subr.mxu0 0.0
    %785 = vmatpush1.msra.mxu0 0.0
    %786 = vmatprep.subr.mxu0 0.0
    %787 = vmatpush1.msra.mxu0 0.0
    %788 = vmatprep.subr.mxu0 0.0
    %789 = vmatpush1.msra.mxu0 0.0
    %790 = vmatprep.subr.mxu0 0.0
    %791 = vmatpush1.msra.mxu0 0.0
    %792 = vmatprep.subr.mxu0 0.0
    %793 = vmatpush1.msra.mxu0 0.0
    %794 = vmatprep.subr.mxu0 0.0
    %795 = vmatpush1.msra.mxu0 0.0
    %796 = vmatprep.subr.mxu0 0.0
    %797 = vmatpush1.msra.mxu0 0.0
    %798 = vmatprep.subr.mxu0 0.0
    %799 = vmatpush1.msra.mxu0 0.0
    %800 = vmatprep.subr.mxu0 0.0
    %801 = vmatpush1.msra.mxu0 0.0
    %802 = vmatprep.subr.mxu0 0.0
    %803 = vmatpush1.msra.mxu0 0.0
    %804 = vmatprep.subr.mxu0 0.0
    %805 = vmatpush1.msra.mxu0 0.0
    %806 = vmatprep.subr.mxu0 0.0
    %807 = vmatpush1.msra.mxu0 0.0
    %808 = vmatprep.subr.mxu0 0.0
    %809 = vmatpush1.msra.mxu0 0.0
    %810 = vmatprep.subr.mxu0 0.0
    %811 = vmatpush1.msra.mxu0 0.0
    %812 = vmatprep.subr.mxu0 0.0
    %813 = vmatpush1.msra.mxu0 0.0
    %814 = vmatprep.subr.mxu0 0.0
    %815 = vmatpush1.msra.mxu0 0.0
    %816 = vmatprep.subr.mxu0 0.0
    %817 = vmatpush1.msra.mxu0 0.0
    %818 = vmatprep.subr.mxu0 0.0
    %819 = vmatpush1.msra.mxu0 0.0
    %820 = vmatprep.subr.mxu0 0.0
    %821 = vmatpush1.msra.mxu0 0.0
    %822 = vmatprep.subr.mxu0 0.0
    %823 = vmatpush1.msra.mxu0 0.0
    %824 = vmatprep.subr.mxu0 0.0
    %825 = vmatpush1.msra.mxu0 0.0
    %826 = vmatprep.subr.mxu0 0.0
    %827 = vmatpush1.msra.mxu0 0.0
    %828 = vmatprep.subr.mxu0 0.0
    %829 = vmatpush1.msra.mxu0 0.0
    %830 = vmatprep.subr.mxu0 0.0
    %831 = vmatpush1.msra.mxu0 0.0
    %832 = vmatprep.subr.mxu0 0.0
    %833 = vmatpush1.msra.mxu0 0.0
    %834 = vmatprep.subr.mxu0 0.0
    %835 = vmatpush1.msra.mxu0 0.0
    %836 = vmatprep.subr.mxu0 0.0
    %837 = vmatpush1.msra.mxu0 0.0
    %838 = vmatprep.subr.mxu0 0.0
    %839 = vmatpush1.msra.mxu0 0.0
    %840 = vmatprep.mubr.f32.mxu0 0.0
    %841 = vmatmul.mubr.f32.gmra.mrb[0].mxu0 %v765
    %v842 = vpop.f32.mrb[0].mxu0
    %v843 = vadd.f32 0.0, %v842
    %v844 = vpop.f32.mrb[0].mxu0
    %845 = vmatprep.mubr.f32.mxu0 0.0
    %846 = vmatmul.mubr.f32.gmra.mrb[0].mxu0 %v768
    %v847 = vpop.f32.mrb[0].mxu0
    %v848 = vadd.f32 0.0, %v847
    %v849 = vpop.f32.mrb[0].mxu0
    %850 = vmatprep.mubr.f32.mxu0 0.0
    %851 = vmatmul.mubr.f32.gmra.mrb[0].mxu0 %v771
    %v852 = vpop.f32.mrb[0].mxu0
    %v853 = vadd.f32 0.0, %v852
    %v854 = vpop.f32.mrb[0].mxu0
    %855 = vmatprep.mubr.f32.mxu0 0.0
    %856 = vmatmul.mubr.f32.gmra.mrb[0].mxu0 %v774
    %v857 = vpop.f32.mrb[0].mxu0
    %v858 = vadd.f32 0.0, %v857
    %v859 = vpop.f32.mrb[0].mxu0
    %860 = vdwg.mxu0
    %vm861 = vcmp.eq.s32.totalorder %v414, 16
    %vm862 = vcmp.eq.s32.totalorder %v415, 16
    %vm863 = vcmp.eq.s32.totalorder %v416, 16
    %vm864 = vcmp.eq.s32.totalorder %v417, 16
    %vm865 = vcmp.eq.s32.totalorder %v414, 15
    %vm866 = vcmp.eq.s32.totalorder %v415, 15
    %vm867 = vcmp.eq.s32.totalorder %v416, 15
    %vm868 = vcmp.eq.s32.totalorder %v417, 15
    %v869 = vsel %vm861, 0.0, %v739
    %v870 = vsel %vm862, 0.0, %v744
    %v871 = vsel %vm863, 0.0, %v749
    %v872 = vsel %vm864, 0.0, %v754
    %v873 = vsel %vm865, 0.0, %v843
    %v874 = vsel %vm866, 0.0, %v848
    %v875 = vsel %vm867, 0.0, %v853
    %v876 = vsel %vm868, 0.0, %v858
    %v878 = vsel %vm609, %v637, 0
    %v881 = vsel %vm609, %v638, 0
    %v884 = vsel %vm609, %v639, 0
    %v887 = vsel %vm609, %v640, 0
    %889 = vmatprep.subr.mxu0 0.0
    %890 = vmatpush1.msra.mxu0 %v652
    %891 = vmatprep.subr.mxu0 0.0
    %892 = vmatpush1.msra.mxu0 %v653
    %893 = vmatprep.subr.mxu0 0.0
    %894 = vmatpush1.msra.mxu0 0.0
    %895 = vmatprep.subr.mxu0 0.0
    %896 = vmatpush1.msra.mxu0 0.0
    %897 = vmatprep.subr.mxu0 0.0
    %898 = vmatpush1.msra.mxu0 0.0
    %899 = vmatprep.subr.mxu0 0.0
    %900 = vmatpush1.msra.mxu0 0.0
    %901 = vmatprep.subr.mxu0 0.0
    %902 = vmatpush1.msra.mxu0 0.0
    %903 = vmatprep.subr.mxu0 0.0
    %904 = vmatpush1.msra.mxu0 0.0
    %905 = vmatprep.subr.mxu0 0.0
    %906 = vmatpush1.msra.mxu0 0.0
    %907 = vmatprep.subr.mxu0 0.0
    %908 = vmatpush1.msra.mxu0 0.0
    %909 = vmatprep.subr.mxu0 0.0
    %910 = vmatpush1.msra.mxu0 0.0
    %911 = vmatprep.subr.mxu0 0.0
    %912 = vmatpush1.msra.mxu0 0.0
    %913 = vmatprep.subr.mxu0 0.0
    %914 = vmatpush1.msra.mxu0 0.0
    %915 = vmatprep.subr.mxu0 0.0
    %916 = vmatpush1.msra.mxu0 0.0
    %917 = vmatprep.subr.mxu0 0.0
    %918 = vmatpush1.msra.mxu0 0.0
    %919 = vmatprep.subr.mxu0 0.0
    %920 = vmatpush1.msra.mxu0 0.0
    %921 = vmatprep.subr.mxu0 0.0
    %922 = vmatpush1.msra.mxu0 0.0
    %923 = vmatprep.subr.mxu0 0.0
    %924 = vmatpush1.msra.mxu0 0.0
    %925 = vmatprep.subr.mxu0 0.0
    %926 = vmatpush1.msra.mxu0 0.0
    %927 = vmatprep.subr.mxu0 0.0
    %928 = vmatpush1.msra.mxu0 0.0
    %929 = vmatprep.subr.mxu0 0.0
    %930 = vmatpush1.msra.mxu0 0.0
    %931 = vmatprep.subr.mxu0 0.0
    %932 = vmatpush1.msra.mxu0 0.0
    %933 = vmatprep.subr.mxu0 0.0
    %934 = vmatpush1.msra.mxu0 0.0
    %935 = vmatprep.subr.mxu0 0.0
    %936 = vmatpush1.msra.mxu0 0.0
    %937 = vmatprep.subr.mxu0 0.0
    %938 = vmatpush1.msra.mxu0 0.0
    %939 = vmatprep.subr.mxu0 0.0
    %940 = vmatpush1.msra.mxu0 0.0
    %941 = vmatprep.subr.mxu0 0.0
    %942 = vmatpush1.msra.mxu0 0.0
    %943 = vmatprep.subr.mxu0 0.0
    %944 = vmatpush1.msra.mxu0 0.0
    %945 = vmatprep.subr.mxu0 0.0
    %946 = vmatpush1.msra.mxu0 0.0
    %947 = vmatprep.subr.mxu0 0.0
    %948 = vmatpush1.msra.mxu0 0.0
    %949 = vmatprep.subr.mxu0 0.0
    %950 = vmatpush1.msra.mxu0 0.0
    %951 = vmatprep.subr.mxu0 0.0
    %952 = vmatpush1.msra.mxu0 0.0
    %953 = vmatprep.mubr.f32.mxu0 0.0
    %954 = vmatmul.mubr.f32.gmra.mrb[0].mxu0 %v878
    %v955 = vpop.f32.mrb[0].mxu0
    %v956 = vadd.f32 %v869, %v955
    %v957 = vpop.f32.mrb[0].mxu0
    %958 = vmatprep.mubr.f32.mxu0 0.0
    %959 = vmatmul.mubr.f32.gmra.mrb[0].mxu0 %v881
    %v960 = vpop.f32.mrb[0].mxu0
    %v961 = vadd.f32 %v870, %v960
    %v962 = vpop.f32.mrb[0].mxu0
    %963 = vmatprep.mubr.f32.mxu0 0.0
    %964 = vmatmul.mubr.f32.gmra.mrb[0].mxu0 %v884
    %v965 = vpop.f32.mrb[0].mxu0
    %v966 = vadd.f32 %v871, %v965
    %v967 = vpop.f32.mrb[0].mxu0
    %968 = vmatprep.mubr.f32.mxu0 0.0
    %969 = vmatmul.mubr.f32.gmra.mrb[0].mxu0 %v887
    %v970 = vpop.f32.mrb[0].mxu0
    %v971 = vadd.f32 %v872, %v970
    %v972 = vpop.f32.mrb[0].mxu0
    %973 = vdwg.mxu0
    %v974 = vadd.f32 %v956, %v873
    %v975 = vadd.f32 %v961, %v874
    %v976 = vadd.f32 %v966, %v875
    %v977 = vadd.f32 %v971, %v876
    %v978 = vld [vmem:[%s4] sm:$0x1]
    %v980 = vlaneseq
    %v981 = vshrl.u32 %v980, 7
    %v982 = vsub.s32 0, %v981
    %v983 = vrot.slane %v978, %v982
    %v985 = vadd.f32 %v974, %v983
    %v986 = vadd.f32 %v975, %v983
    %v987 = vadd.f32 %v976, %v983
    %v988 = vadd.f32 %v977, %v983
    %vm989 = vcmask 261120
    %990 = vst.msk [vmem:[#allocation5] sm:$0xff] %vm989, %v985
    %991 = vst.msk [vmem:[#allocation5 + $0x8] sm:$0xff] %vm989, %v986
    %992 = vst.msk [vmem:[#allocation5 + $0x10] sm:$0xff] %vm989, %v987
    %993 = vst.msk [vmem:[#allocation5 + $0x18] sm:$0xff] %vm989, %v988
    %v994 = vld [vmem:[#allocation5] ss:$2 sm:$0xff]
    %s995 = scalar_lea.vmem [#allocation5], 16
    %v996 = vld [vmem:[%s995] ss:$2 sm:$0xff]
    %s997 = scalar_lea.vmem [#allocation5], 1
    %v998 = vld [vmem:[%s997] ss:$2 sm:$0xff]
    %s999 = scalar_lea.vmem [#allocation5], 17
    %v1000 = vld [vmem:[%s999] ss:$2 sm:$0xff]
    %v1001 = vmax.f32 %v994, %v998
    %v1002 = vmax.f32 %v996, %v1000
    %v1003 = vmax.f32 %v1001, 0.0
    %v1004 = vmax.f32 %v1002, 0.0
    %1005 = vst.msk [vmem:[#allocation6] sm:$0xff] %vm989, 0.0
    %1006 = vst.msk [vmem:[#allocation6 + $0x8] sm:$0xff] %vm989, 0.0
    %1007 = vst.msk [vmem:[#allocation6 + $0x10] sm:$0xff] %vm989, 0.0
    %1008 = vst.msk [vmem:[#allocation6 + $0x18] sm:$0xff] %vm989, 0.0
    %1009 = vst.msk [vmem:[#allocation6 + $0x8] sm:$0xff] %vm989, %v1003
    %1010 = vst.msk [vmem:[#allocation6 + $0x10] sm:$0xff] %vm989, %v1004
    %s1011 = scalar_lea.vmem [#allocation9], 32
    %v1012 = vld [vmem:[%s1011] sm:$0xff]
    %v1013 = vld [vmem:[%s1011 + $0x8] sm:$0xff]
    %v1014 = vld [vmem:[%s1011 + $0x10] sm:$0xff]
    %v1015 = vld [vmem:[%s1011 + $0x18] sm:$0xff]
    %v1016 = vld [vmem:[#allocation6 + $0x7] sm:$0xff]
    %v1017 = vld [vmem:[#allocation6 + $0xf] sm:$0xff]
    %v1018 = vld [vmem:[#allocation9] sm:$0xff]
    %v1019 = vld [vmem:[#allocation9 + $0x8] sm:$0xff]
    %v1020 = vld [vmem:[#allocation9 + $0x10] sm:$0xff]
    %v1021 = vld [vmem:[#allocation9 + $0x18] sm:$0xff]
    %v1023 = vsel %vm989, %v1016, 0
    %v1026 = vsel %vm989, %v1017, 0
    %1028 = vmatprep.subr.mxu0 0.0
    %1029 = vmatpush1.msra.mxu0 %v1018
    %1030 = vmatprep.subr.mxu0 0.0
    %1031 = vmatpush1.msra.mxu0 %v1019
    %1032 = vmatprep.subr.mxu0 0.0
    %1033 = vmatpush1.msra.mxu0 %v1020
    %1034 = vmatprep.subr.mxu0 0.0
    %1035 = vmatpush1.msra.mxu0 %v1021
    %1036 = vmatprep.subr.mxu0 0.0
    %1037 = vmatpush1.msra.mxu0 0.0
    %1038 = vmatprep.subr.mxu0 0.0
    %1039 = vmatpush1.msra.mxu0 0.0
    %1040 = vmatprep.subr.mxu0 0.0
    %1041 = vmatpush1.msra.mxu0 0.0
    %1042 = vmatprep.subr.mxu0 0.0
    %1043 = vmatpush1.msra.mxu0 0.0
    %1044 = vmatprep.subr.mxu0 0.0
    %1045 = vmatpush1.msra.mxu0 0.0
    %1046 = vmatprep.subr.mxu0 0.0
    %1047 = vmatpush1.msra.mxu0 0.0
    %1048 = vmatprep.subr.mxu0 0.0
    %1049 = vmatpush1.msra.mxu0 0.0
    %1050 = vmatprep.subr.mxu0 0.0
    %1051 = vmatpush1.msra.mxu0 0.0
    %1052 = vmatprep.subr.mxu0 0.0
    %1053 = vmatpush1.msra.mxu0 0.0
    %1054 = vmatprep.subr.mxu0 0.0
    %1055 = vmatpush1.msra.mxu0 0.0
    %1056 = vmatprep.subr.mxu0 0.0
    %1057 = vmatpush1.msra.mxu0 0.0
    %1058 = vmatprep.subr.mxu0 0.0
    %1059 = vmatpush1.msra.mxu0 0.0
    %1060 = vmatprep.subr.mxu0 0.0
    %1061 = vmatpush1.msra.mxu0 0.0
    %1062 = vmatprep.subr.mxu0 0.0
    %1063 = vmatpush1.msra.mxu0 0.0
    %1064 = vmatprep.subr.mxu0 0.0
    %1065 = vmatpush1.msra.mxu0 0.0
    %1066 = vmatprep.subr.mxu0 0.0
    %1067 = vmatpush1.msra.mxu0 0.0
    %1068 = vmatprep.subr.mxu0 0.0
    %1069 = vmatpush1.msra.mxu0 0.0
    %1070 = vmatprep.subr.mxu0 0.0
    %1071 = vmatpush1.msra.mxu0 0.0
    %1072 = vmatprep.subr.mxu0 0.0
    %1073 = vmatpush1.msra.mxu0 0.0
    %1074 = vmatprep.subr.mxu0 0.0
    %1075 = vmatpush1.msra.mxu0 0.0
    %1076 = vmatprep.subr.mxu0 0.0
    %1077 = vmatpush1.msra.mxu0 0.0
    %1078 = vmatprep.subr.mxu0 0.0
    %1079 = vmatpush1.msra.mxu0 0.0
    %1080 = vmatprep.subr.mxu0 0.0
    %1081 = vmatpush1.msra.mxu0 0.0
    %1082 = vmatprep.subr.mxu0 0.0
    %1083 = vmatpush1.msra.mxu0 0.0
    %1084 = vmatprep.subr.mxu0 0.0
    %1085 = vmatpush1.msra.mxu0 0.0
    %1086 = vmatprep.subr.mxu0 0.0
    %1087 = vmatpush1.msra.mxu0 0.0
    %1088 = vmatprep.subr.mxu0 0.0
    %1089 = vmatpush1.msra.mxu0 0.0
    %1090 = vmatprep.subr.mxu0 0.0
    %1091 = vmatpush1.msra.mxu0 0.0
    %1092 = vmatprep.mubr.f32.mxu0 0.0
    %1093 = vmatmul.mubr.f32.gmra.mrb[0].mxu0 %v1023
    %v1094 = vpop.f32.mrb[0].mxu0
    %v1095 = vadd.f32 0.0, %v1094
    %v1096 = vpop.f32.mrb[0].mxu0
    %1097 = vmatprep.mubr.f32.mxu0 0.0
    %1098 = vmatmul.mubr.f32.gmra.mrb[0].mxu0 %v1026
    %v1099 = vpop.f32.mrb[0].mxu0
    %v1100 = vadd.f32 0.0, %v1099
    %v1101 = vpop.f32.mrb[0].mxu0
    %1102 = vdwg.mxu0
    %v1103 = vld [vmem:[#allocation6 + $0x9] sm:$0xff]
    %v1104 = vld [vmem:[#allocation6 + $0x11] sm:$0xff]
    %s1105 = scalar_lea.vmem [#allocation9], 64
    %v1106 = vld [vmem:[%s1105] sm:$0xff]
    %v1107 = vld [vmem:[%s1105 + $0x8] sm:$0xff]
    %v1108 = vld [vmem:[%s1105 + $0x10] sm:$0xff]
    %v1109 = vld [vmem:[%s1105 + $0x18] sm:$0xff]
    %v1111 = vsel %vm989, %v1103, 0
    %v1114 = vsel %vm989, %v1104, 0
    %1116 = vmatprep.subr.mxu0 0.0
    %1117 = vmatpush1.msra.mxu0 %v1106
    %1118 = vmatprep.subr.mxu0 0.0
    %1119 = vmatpush1.msra.mxu0 %v1107
    %1120 = vmatprep.subr.mxu0 0.0
    %1121 = vmatpush1.msra.mxu0 %v1108
    %1122 = vmatprep.subr.mxu0 0.0
    %1123 = vmatpush1.msra.mxu0 %v1109
    %1124 = vmatprep.subr.mxu0 0.0
    %1125 = vmatpush1.msra.mxu0 0.0
    %1126 = vmatprep.subr.mxu0 0.0
    %1127 = vmatpush1.msra.mxu0 0.0
    %1128 = vmatprep.subr.mxu0 0.0
    %1129 = vmatpush1.msra.mxu0 0.0
    %1130 = vmatprep.subr.mxu0 0.0
    %1131 = vmatpush1.msra.mxu0 0.0
    %1132 = vmatprep.subr.mxu0 0.0
    %1133 = vmatpush1.msra.mxu0 0.0
    %1134 = vmatprep.subr.mxu0 0.0
    %1135 = vmatpush1.msra.mxu0 0.0
    %1136 = vmatprep.subr.mxu0 0.0
    %1137 = vmatpush1.msra.mxu0 0.0
    %1138 = vmatprep.subr.mxu0 0.0
    %1139 = vmatpush1.msra.mxu0 0.0
    %1140 = vmatprep.subr.mxu0 0.0
    %1141 = vmatpush1.msra.mxu0 0.0
    %1142 = vmatprep.subr.mxu0 0.0
    %1143 = vmatpush1.msra.mxu0 0.0
    %1144 = vmatprep.subr.mxu0 0.0
    %1145 = vmatpush1.msra.mxu0 0.0
    %1146 = vmatprep.subr.mxu0 0.0
    %1147 = vmatpush1.msra.mxu0 0.0
    %1148 = vmatprep.subr.mxu0 0.0
    %1149 = vmatpush1.msra.mxu0 0.0
    %1150 = vmatprep.subr.mxu0 0.0
    %1151 = vmatpush1.msra.mxu0 0.0
    %1152 = vmatprep.subr.mxu0 0.0
    %1153 = vmatpush1.msra.mxu0 0.0
    %1154 = vmatprep.subr.mxu0 0.0
    %1155 = vmatpush1.msra.mxu0 0.0
    %1156 = vmatprep.subr.mxu0 0.0
    %1157 = vmatpush1.msra.mxu0 0.0
    %1158 = vmatprep.subr.mxu0 0.0
    %1159 = vmatpush1.msra.mxu0 0.0
    %1160 = vmatprep.subr.mxu0 0.0
    %1161 = vmatpush1.msra.mxu0 0.0
    %1162 = vmatprep.subr.mxu0 0.0
    %1163 = vmatpush1.msra.mxu0 0.0
    %1164 = vmatprep.subr.mxu0 0.0
    %1165 = vmatpush1.msra.mxu0 0.0
    %1166 = vmatprep.subr.mxu0 0.0
    %1167 = vmatpush1.msra.mxu0 0.0
    %1168 = vmatprep.subr.mxu0 0.0
    %1169 = vmatpush1.msra.mxu0 0.0
    %1170 = vmatprep.subr.mxu0 0.0
    %1171 = vmatpush1.msra.mxu0 0.0
    %1172 = vmatprep.subr.mxu0 0.0
    %1173 = vmatpush1.msra.mxu0 0.0
    %1174 = vmatprep.subr.mxu0 0.0
    %1175 = vmatpush1.msra.mxu0 0.0
    %1176 = vmatprep.subr.mxu0 0.0
    %1177 = vmatpush1.msra.mxu0 0.0
    %1178 = vmatprep.subr.mxu0 0.0
    %1179 = vmatpush1.msra.mxu0 0.0
    %1180 = vmatprep.mubr.f32.mxu0 0.0
    %1181 = vmatmul.mubr.f32.gmra.mrb[0].mxu0 %v1111
    %v1182 = vpop.f32.mrb[0].mxu0
    %v1183 = vadd.f32 0.0, %v1182
    %v1184 = vpop.f32.mrb[0].mxu0
    %1185 = vmatprep.mubr.f32.mxu0 0.0
    %1186 = vmatmul.mubr.f32.gmra.mrb[0].mxu0 %v1114
    %v1187 = vpop.f32.mrb[0].mxu0
    %v1188 = vadd.f32 0.0, %v1187
    %v1189 = vpop.f32.mrb[0].mxu0
    %1190 = vdwg.mxu0
    %vm1191 = vcmp.eq.s32.totalorder %v414, 8
    %vm1192 = vcmp.eq.s32.totalorder %v415, 8
    %vm1193 = vcmp.eq.s32.totalorder %v414, 7
    %vm1194 = vcmp.eq.s32.totalorder %v415, 7
    %v1195 = vsel %vm1191, 0.0, %v1095
    %v1196 = vsel %vm1192, 0.0, %v1100
    %v1197 = vsel %vm1193, 0.0, %v1183
    %v1198 = vsel %vm1194, 0.0, %v1188
    %v1200 = vsel %vm989, %v1003, 0
    %v1203 = vsel %vm989, %v1004, 0
    %1205 = vmatprep.subr.mxu0 0.0
    %1206 = vmatpush1.msra.mxu0 %v1012
    %1207 = vmatprep.subr.mxu0 0.0
    %1208 = vmatpush1.msra.mxu0 %v1013
    %1209 = vmatprep.subr.mxu0 0.0
    %1210 = vmatpush1.msra.mxu0 %v1014
    %1211 = vmatprep.subr.mxu0 0.0
    %1212 = vmatpush1.msra.mxu0 %v1015
    %1213 = vmatprep.subr.mxu0 0.0
    %1214 = vmatpush1.msra.mxu0 0.0
    %1215 = vmatprep.subr.mxu0 0.0
    %1216 = vmatpush1.msra.mxu0 0.0
    %1217 = vmatprep.subr.mxu0 0.0
    %1218 = vmatpush1.msra.mxu0 0.0
    %1219 = vmatprep.subr.mxu0 0.0
    %1220 = vmatpush1.msra.mxu0 0.0
    %1221 = vmatprep.subr.mxu0 0.0
    %1222 = vmatpush1.msra.mxu0 0.0
    %1223 = vmatprep.subr.mxu0 0.0
    %1224 = vmatpush1.msra.mxu0 0.0
    %1225 = vmatprep.subr.mxu0 0.0
    %1226 = vmatpush1.msra.mxu0 0.0
    %1227 = vmatprep.subr.mxu0 0.0
    %1228 = vmatpush1.msra.mxu0 0.0
    %1229 = vmatprep.subr.mxu0 0.0
    %1230 = vmatpush1.msra.mxu0 0.0
    %1231 = vmatprep.subr.mxu0 0.0
    %1232 = vmatpush1.msra.mxu0 0.0
    %1233 = vmatprep.subr.mxu0 0.0
    %1234 = vmatpush1.msra.mxu0 0.0
    %1235 = vmatprep.subr.mxu0 0.0
    %1236 = vmatpush1.msra.mxu0 0.0
    %1237 = vmatprep.subr.mxu0 0.0
    %1238 = vmatpush1.msra.mxu0 0.0
    %1239 = vmatprep.subr.mxu0 0.0
    %1240 = vmatpush1.msra.mxu0 0.0
    %1241 = vmatprep.subr.mxu0 0.0
    %1242 = vmatpush1.msra.mxu0 0.0
    %1243 = vmatprep.subr.mxu0 0.0
    %1244 = vmatpush1.msra.mxu0 0.0
    %1245 = vmatprep.subr.mxu0 0.0
    %1246 = vmatpush1.msra.mxu0 0.0
    %1247 = vmatprep.subr.mxu0 0.0
    %1248 = vmatpush1.msra.mxu0 0.0
    %1249 = vmatprep.subr.mxu0 0.0
    %1250 = vmatpush1.msra.mxu0 0.0
    %1251 = vmatprep.subr.mxu0 0.0
    %1252 = vmatpush1.msra.mxu0 0.0
    %1253 = vmatprep.subr.mxu0 0.0
    %1254 = vmatpush1.msra.mxu0 0.0
    %1255 = vmatprep.subr.mxu0 0.0
    %1256 = vmatpush1.msra.mxu0 0.0
    %1257 = vmatprep.subr.mxu0 0.0
    %1258 = vmatpush1.msra.mxu0 0.0
    %1259 = vmatprep.subr.mxu0 0.0
    %1260 = vmatpush1.msra.mxu0 0.0
    %1261 = vmatprep.subr.mxu0 0.0
    %1262 = vmatpush1.msra.mxu0 0.0
    %1263 = vmatprep.subr.mxu0 0.0
    %1264 = vmatpush1.msra.mxu0 0.0
    %1265 = vmatprep.subr.mxu0 0.0
    %1266 = vmatpush1.msra.mxu0 0.0
    %1267 = vmatprep.subr.mxu0 0.0
    %1268 = vmatpush1.msra.mxu0 0.0
    %1269 = vmatprep.mubr.f32.mxu0 0.0
    %1270 = vmatmul.mubr.f32.gmra.mrb[0].mxu0 %v1200
    %v1271 = vpop.f32.mrb[0].mxu0
    %v1272 = vadd.f32 %v1195, %v1271
    %v1273 = vpop.f32.mrb[0].mxu0
    %1274 = vmatprep.mubr.f32.mxu0 0.0
    %1275 = vmatmul.mubr.f32.gmra.mrb[0].mxu0 %v1203
    %v1276 = vpop.f32.mrb[0].mxu0
    %v1277 = vadd.f32 %v1196, %v1276
    %v1278 = vpop.f32.mrb[0].mxu0
    %1279 = vdwg.mxu0
    %v1280 = vadd.f32 %v1272, %v1197
    %v1281 = vadd.f32 %v1277, %v1198
    %v1282 = vld [vmem:[%s6] sm:$0x1]
    %v1284 = vlaneseq
    %v1285 = vshrl.u32 %v1284, 7
    %v1286 = vsub.s32 0, %v1285
    %v1287 = vrot.slane %v1282, %v1286
    %v1289 = vadd.f32 %v1280, %v1287
    %v1290 = vadd.f32 %v1281, %v1287
    %vm1291 = vcmask 523264
    %1292 = vst.msk [vmem:[#allocation7] sm:$0xff] %vm1291, %v1289
    %1293 = vst.msk [vmem:[#allocation7 + $0x8] sm:$0xff] %vm1291, %v1290
    %v1294 = vld [vmem:[#allocation7] ss:$2 sm:$0xff]
    %s1295 = scalar_lea.vmem [#allocation7], 1
    %v1296 = vld [vmem:[%s1295] ss:$2 sm:$0xff]
    %v1297 = vmax.f32 %v1294, %v1296
    %v1298 = vmax.f32 %v1297, 0.0
    %1299 = vst.msk [vmem:[#allocation8] sm:$0xff] %vm1291, %v1298
    %v1300 = vld [vmem:[#allocation8] ss:$4 sm:$0x3]
    %v1301 = vld [vmem:[#allocation12] sm:$0xff]
    %v1302 = vld [vmem:[#allocation12 + $0x8] sm:$0xff]
    %v1303 = vld [vmem:[#allocation12 + $0x10] sm:$0xff]
    %v1304 = vld [vmem:[#allocation12 + $0x18] sm:$0xff]
    %v1305 = vld [vmem:[#allocation12 + $0x20] sm:$0xff]
    %v1306 = vld [vmem:[#allocation12 + $0x28] sm:$0xff]
    %v1307 = vld [vmem:[#allocation12 + $0x30] sm:$0xff]
    %v1308 = vld [vmem:[#allocation12 + $0x38] sm:$0xff]
    %v1309 = vld [vmem:[#allocation12 + $0x40] sm:$0xff]
    %v1310 = vld [vmem:[#allocation12 + $0x48] sm:$0xff]
    %v1311 = vld [vmem:[#allocation12 + $0x50] sm:$0xff]
    %v1312 = vld [vmem:[#allocation12 + $0x58] sm:$0xff]
    %v1313 = vld [vmem:[#allocation12 + $0x60] sm:$0xff]
    %v1314 = vld [vmem:[#allocation12 + $0x68] sm:$0xff]
    %v1315 = vld [vmem:[#allocation12 + $0x70] sm:$0xff]
    %v1316 = vld [vmem:[#allocation12 + $0x78] sm:$0xff]
    %v1317 = vld [vmem:[#allocation12 + $0x80] sm:$0xff]
    %v1318 = vld [vmem:[#allocation12 + $0x88] sm:$0xff]
    %v1319 = vld [vmem:[#allocation12 + $0x90] sm:$0xff]
    %v1320 = vld [vmem:[#allocation12 + $0x98] sm:$0xff]
    %v1321 = vld [vmem:[#allocation12 + $0xa0] sm:$0xff]
    %v1322 = vld [vmem:[#allocation12 + $0xa8] sm:$0xff]
    %v1323 = vld [vmem:[#allocation12 + $0xb0] sm:$0xff]
    %v1324 = vld [vmem:[#allocation12 + $0xb8] sm:$0xff]
    %v1325 = vld [vmem:[#allocation12 + $0xc0] sm:$0xff]
    %v1326 = vld [vmem:[#allocation12 + $0xc8] sm:$0xff]
    %v1327 = vld [vmem:[#allocation12 + $0xd0] sm:$0xff]
    %v1328 = vld [vmem:[#allocation12 + $0xd8] sm:$0xff]
    %v1329 = vld [vmem:[#allocation12 + $0xe0] sm:$0xff]
    %v1330 = vld [vmem:[#allocation12 + $0xe8] sm:$0xff]
    %v1331 = vld [vmem:[#allocation12 + $0xf0] sm:$0xff]
    %v1332 = vld [vmem:[#allocation12 + $0xf8] sm:$0xff]
    %s1333 = scalar_lea.vmem [#allocation8], 1
    %v1334 = vld [vmem:[%s1333] ss:$4 sm:$0x3]
    %s1335 = scalar_lea.vmem [#allocation12], 256
    %v1336 = vld [vmem:[%s1335] sm:$0xff]
    %v1337 = vld [vmem:[%s1335 + $0x8] sm:$0xff]
    %v1338 = vld [vmem:[%s1335 + $0x10] sm:$0xff]
    %v1339 = vld [vmem:[%s1335 + $0x18] sm:$0xff]
    %v1340 = vld [vmem:[%s1335 + $0x20] sm:$0xff]
    %v1341 = vld [vmem:[%s1335 + $0x28] sm:$0xff]
    %v1342 = vld [vmem:[%s1335 + $0x30] sm:$0xff]
    %v1343 = vld [vmem:[%s1335 + $0x38] sm:$0xff]
    %v1344 = vld [vmem:[%s1335 + $0x40] sm:$0xff]
    %v1345 = vld [vmem:[%s1335 + $0x48] sm:$0xff]
    %v1346 = vld [vmem:[%s1335 + $0x50] sm:$0xff]
    %v1347 = vld [vmem:[%s1335 + $0x58] sm:$0xff]
    %v1348 = vld [vmem:[%s1335 + $0x60] sm:$0xff]
    %v1349 = vld [vmem:[%s1335 + $0x68] sm:$0xff]
    %v1350 = vld [vmem:[%s1335 + $0x70] sm:$0xff]
    %v1351 = vld [vmem:[%s1335 + $0x78] sm:$0xff]
    %v1352 = vld [vmem:[%s1335 + $0x80] sm:$0xff]
    %v1353 = vld [vmem:[%s1335 + $0x88] sm:$0xff]
    %v1354 = vld [vmem:[%s1335 + $0x90] sm:$0xff]
    %v1355 = vld [vmem:[%s1335 + $0x98] sm:$0xff]
    %v1356 = vld [vmem:[%s1335 + $0xa0] sm:$0xff]
    %v1357 = vld [vmem:[%s1335 + $0xa8] sm:$0xff]
    %v1358 = vld [vmem:[%s1335 + $0xb0] sm:$0xff]
    %v1359 = vld [vmem:[%s1335 + $0xb8] sm:$0xff]
    %v1360 = vld [vmem:[%s1335 + $0xc0] sm:$0xff]
    %v1361 = vld [vmem:[%s1335 + $0xc8] sm:$0xff]
    %v1362 = vld [vmem:[%s1335 + $0xd0] sm:$0xff]
    %v1363 = vld [vmem:[%s1335 + $0xd8] sm:$0xff]
    %v1364 = vld [vmem:[%s1335 + $0xe0] sm:$0xff]
    %v1365 = vld [vmem:[%s1335 + $0xe8] sm:$0xff]
    %v1366 = vld [vmem:[%s1335 + $0xf0] sm:$0xff]
    %v1367 = vld [vmem:[%s1335 + $0xf8] sm:$0xff]
    %v1369 = vsel %vm1291, %v1334, 0
    %1371 = vmatprep.subr.mxu0 %v1337
    %1372 = vmatpush1.msra.mxu0 %v1336
    %1373 = vmatprep.subr.mxu0 %v1341
    %1374 = vmatpush1.msra.mxu0 %v1340
    %1375 = vmatprep.subr.mxu0 %v1345
    %1376 = vmatpush1.msra.mxu0 %v1344
    %1377 = vmatprep.subr.mxu0 %v1349
    %1378 = vmatpush1.msra.mxu0 %v1348
    %1379 = vmatprep.subr.mxu0 %v1353
    %1380 = vmatpush1.msra.mxu0 %v1352
    %1381 = vmatprep.subr.mxu0 %v1357
    %1382 = vmatpush1.msra.mxu0 %v1356
    %1383 = vmatprep.subr.mxu0 %v1361
    %1384 = vmatpush1.msra.mxu0 %v1360
    %1385 = vmatprep.subr.mxu0 %v1365
    %1386 = vmatpush1.msra.mxu0 %v1364
    %1387 = vmatprep.subr.mxu0 0.0
    %1388 = vmatpush1.msra.mxu0 0.0
    %1389 = vmatprep.subr.mxu0 0.0
    %1390 = vmatpush1.msra.mxu0 0.0
    %1391 = vmatprep.subr.mxu0 0.0
    %1392 = vmatpush1.msra.mxu0 0.0
    %1393 = vmatprep.subr.mxu0 0.0
    %1394 = vmatpush1.msra.mxu0 0.0
    %1395 = vmatprep.subr.mxu0 0.0
    %1396 = vmatpush1.msra.mxu0 0.0
    %1397 = vmatprep.subr.mxu0 0.0
    %1398 = vmatpush1.msra.mxu0 0.0
    %1399 = vmatprep.subr.mxu0 0.0
    %1400 = vmatpush1.msra.mxu0 0.0
    %1401 = vmatprep.subr.mxu0 0.0
    %1402 = vmatpush1.msra.mxu0 0.0
    %1403 = vmatprep.subr.mxu0 0.0
    %1404 = vmatpush1.msra.mxu0 0.0
    %1405 = vmatprep.subr.mxu0 0.0
    %1406 = vmatpush1.msra.mxu0 0.0
    %1407 = vmatprep.subr.mxu0 0.0
    %1408 = vmatpush1.msra.mxu0 0.0
    %1409 = vmatprep.subr.mxu0 0.0
    %1410 = vmatpush1.msra.mxu0 0.0
    %1411 = vmatprep.subr.mxu0 0.0
    %1412 = vmatpush1.msra.mxu0 0.0
    %1413 = vmatprep.subr.mxu0 0.0
    %1414 = vmatpush1.msra.mxu0 0.0
    %1415 = vmatprep.subr.mxu0 0.0
    %1416 = vmatpush1.msra.mxu0 0.0
    %1417 = vmatprep.subr.mxu0 0.0
    %1418 = vmatpush1.msra.mxu0 0.0
    %1419 = vmatprep.subr.mxu0 0.0
    %1420 = vmatpush1.msra.mxu0 0.0
    %1421 = vmatprep.subr.mxu0 0.0
    %1422 = vmatpush1.msra.mxu0 0.0
    %1423 = vmatprep.subr.mxu0 0.0
    %1424 = vmatpush1.msra.mxu0 0.0
    %1425 = vmatprep.subr.mxu0 0.0
    %1426 = vmatpush1.msra.mxu0 0.0
    %1427 = vmatprep.subr.mxu0 0.0
    %1428 = vmatpush1.msra.mxu0 0.0
    %1429 = vmatprep.subr.mxu0 0.0
    %1430 = vmatpush1.msra.mxu0 0.0
    %1431 = vmatprep.subr.mxu0 0.0
    %1432 = vmatpush1.msra.mxu0 0.0
    %1433 = vmatprep.subr.mxu0 0.0
    %1434 = vmatpush1.msra.mxu0 0.0
    %1435 = vmatprep.mubr.f32.mxu0 0.0
    %1436 = vmatmul.mubr.f32.gmra.mrb[0].mxu0 %v1369
    %v1437 = vpop.f32.mrb[0].mxu0
    %v1438 = vadd.f32 0.0, %v1437
    %v1439 = vpop.f32.mrb[0].mxu0
    %v1440 = vadd.f32 0.0, %v1439
    %1441 = vdwg.mxu0
    %1442 = vmatprep.subr.mxu0 %v1339
    %1443 = vmatpush1.msra.mxu0 %v1338
    %1444 = vmatprep.subr.mxu0 %v1343
    %1445 = vmatpush1.msra.mxu0 %v1342
    %1446 = vmatprep.subr.mxu0 %v1347
    %1447 = vmatpush1.msra.mxu0 %v1346
    %1448 = vmatprep.subr.mxu0 %v1351
    %1449 = vmatpush1.msra.mxu0 %v1350
    %1450 = vmatprep.subr.mxu0 %v1355
    %1451 = vmatpush1.msra.mxu0 %v1354
    %1452 = vmatprep.subr.mxu0 %v1359
    %1453 = vmatpush1.msra.mxu0 %v1358
    %1454 = vmatprep.subr.mxu0 %v1363
    %1455 = vmatpush1.msra.mxu0 %v1362
    %1456 = vmatprep.subr.mxu0 %v1367
    %1457 = vmatpush1.msra.mxu0 %v1366
    %1458 = vmatprep.subr.mxu0 0.0
    %1459 = vmatpush1.msra.mxu0 0.0
    %1460 = vmatprep.subr.mxu0 0.0
    %1461 = vmatpush1.msra.mxu0 0.0
    %1462 = vmatprep.subr.mxu0 0.0
    %1463 = vmatpush1.msra.mxu0 0.0
    %1464 = vmatprep.subr.mxu0 0.0
    %1465 = vmatpush1.msra.mxu0 0.0
    %1466 = vmatprep.subr.mxu0 0.0
    %1467 = vmatpush1.msra.mxu0 0.0
    %1468 = vmatprep.subr.mxu0 0.0
    %1469 = vmatpush1.msra.mxu0 0.0
    %1470 = vmatprep.subr.mxu0 0.0
    %1471 = vmatpush1.msra.mxu0 0.0
    %1472 = vmatprep.subr.mxu0 0.0
    %1473 = vmatpush1.msra.mxu0 0.0
    %1474 = vmatprep.subr.mxu0 0.0
    %1475 = vmatpush1.msra.mxu0 0.0
    %1476 = vmatprep.subr.mxu0 0.0
    %1477 = vmatpush1.msra.mxu0 0.0
    %1478 = vmatprep.subr.mxu0 0.0
    %1479 = vmatpush1.msra.mxu0 0.0
    %1480 = vmatprep.subr.mxu0 0.0
    %1481 = vmatpush1.msra.mxu0 0.0
    %1482 = vmatprep.subr.mxu0 0.0
    %1483 = vmatpush1.msra.mxu0 0.0
    %1484 = vmatprep.subr.mxu0 0.0
    %1485 = vmatpush1.msra.mxu0 0.0
    %1486 = vmatprep.subr.mxu0 0.0
    %1487 = vmatpush1.msra.mxu0 0.0
    %1488 = vmatprep.subr.mxu0 0.0
    %1489 = vmatpush1.msra.mxu0 0.0
    %1490 = vmatprep.subr.mxu0 0.0
    %1491 = vmatpush1.msra.mxu0 0.0
    %1492 = vmatprep.subr.mxu0 0.0
    %1493 = vmatpush1.msra.mxu0 0.0
    %1494 = vmatprep.subr.mxu0 0.0
    %1495 = vmatpush1.msra.mxu0 0.0
    %1496 = vmatprep.subr.mxu0 0.0
    %1497 = vmatpush1.msra.mxu0 0.0
    %1498 = vmatprep.subr.mxu0 0.0
    %1499 = vmatpush1.msra.mxu0 0.0
    %1500 = vmatprep.subr.mxu0 0.0
    %1501 = vmatpush1.msra.mxu0 0.0
    %1502 = vmatprep.subr.mxu0 0.0
    %1503 = vmatpush1.msra.mxu0 0.0
    %1504 = vmatprep.subr.mxu0 0.0
    %1505 = vmatpush1.msra.mxu0 0.0
    %1506 = vmatprep.mubr.f32.mxu0 0.0
    %1507 = vmatmul.mubr.f32.gmra.mrb[0].mxu0 %v1369
    %v1508 = vpop.f32.mrb[0].mxu0
    %v1509 = vadd.f32 0.0, %v1508
    %v1510 = vpop.f32.mrb[0].mxu0
    %v1511 = vadd.f32 0.0, %v1510
    %1512 = vdwg.mxu0
    %v1514 = vsel %vm1291, %v1300, 0
    %1516 = vmatprep.subr.mxu0 %v1302
    %1517 = vmatpush1.msra.mxu0 %v1301
    %1518 = vmatprep.subr.mxu0 %v1306
    %1519 = vmatpush1.msra.mxu0 %v1305
    %1520 = vmatprep.subr.mxu0 %v1310
    %1521 = vmatpush1.msra.mxu0 %v1309
    %1522 = vmatprep.subr.mxu0 %v1314
    %1523 = vmatpush1.msra.mxu0 %v1313
    %1524 = vmatprep.subr.mxu0 %v1318
    %1525 = vmatpush1.msra.mxu0 %v1317
    %1526 = vmatprep.subr.mxu0 %v1322
    %1527 = vmatpush1.msra.mxu0 %v1321
    %1528 = vmatprep.subr.mxu0 %v1326
    %1529 = vmatpush1.msra.mxu0 %v1325
    %1530 = vmatprep.subr.mxu0 %v1330
    %1531 = vmatpush1.msra.mxu0 %v1329
    %1532 = vmatprep.subr.mxu0 0.0
    %1533 = vmatpush1.msra.mxu0 0.0
    %1534 = vmatprep.subr.mxu0 0.0
    %1535 = vmatpush1.msra.mxu0 0.0
    %1536 = vmatprep.subr.mxu0 0.0
    %1537 = vmatpush1.msra.mxu0 0.0
    %1538 = vmatprep.subr.mxu0 0.0
    %1539 = vmatpush1.msra.mxu0 0.0
    %1540 = vmatprep.subr.mxu0 0.0
    %1541 = vmatpush1.msra.mxu0 0.0
    %1542 = vmatprep.subr.mxu0 0.0
    %1543 = vmatpush1.msra.mxu0 0.0
    %1544 = vmatprep.subr.mxu0 0.0
    %1545 = vmatpush1.msra.mxu0 0.0
    %1546 = vmatprep.subr.mxu0 0.0
    %1547 = vmatpush1.msra.mxu0 0.0
    %1548 = vmatprep.subr.mxu0 0.0
    %1549 = vmatpush1.msra.mxu0 0.0
    %1550 = vmatprep.subr.mxu0 0.0
    %1551 = vmatpush1.msra.mxu0 0.0
    %1552 = vmatprep.subr.mxu0 0.0
    %1553 = vmatpush1.msra.mxu0 0.0
    %1554 = vmatprep.subr.mxu0 0.0
    %1555 = vmatpush1.msra.mxu0 0.0
    %1556 = vmatprep.subr.mxu0 0.0
    %1557 = vmatpush1.msra.mxu0 0.0
    %1558 = vmatprep.subr.mxu0 0.0
    %1559 = vmatpush1.msra.mxu0 0.0
    %1560 = vmatprep.subr.mxu0 0.0
    %1561 = vmatpush1.msra.mxu0 0.0
    %1562 = vmatprep.subr.mxu0 0.0
    %1563 = vmatpush1.msra.mxu0 0.0
    %1564 = vmatprep.subr.mxu0 0.0
    %1565 = vmatpush1.msra.mxu0 0.0
    %1566 = vmatprep.subr.mxu0 0.0
    %1567 = vmatpush1.msra.mxu0 0.0
    %1568 = vmatprep.subr.mxu0 0.0
    %1569 = vmatpush1.msra.mxu0 0.0
    %1570 = vmatprep.subr.mxu0 0.0
    %1571 = vmatpush1.msra.mxu0 0.0
    %1572 = vmatprep.subr.mxu0 0.0
    %1573 = vmatpush1.msra.mxu0 0.0
    %1574 = vmatprep.subr.mxu0 0.0
    %1575 = vmatpush1.msra.mxu0 0.0
    %1576 = vmatprep.subr.mxu0 0.0
    %1577 = vmatpush1.msra.mxu0 0.0
    %1578 = vmatprep.subr.mxu0 0.0
    %1579 = vmatpush1.msra.mxu0 0.0
    %1580 = vmatprep.mubr.f32.mxu0 0.0
    %1581 = vmatmul.mubr.f32.gmra.mrb[0].mxu0 %v1514
    %v1582 = vpop.f32.mrb[0].mxu0
    %v1583 = vadd.f32 %v1438, %v1582
    %v1584 = vpop.f32.mrb[0].mxu0
    %v1585 = vadd.f32 %v1440, %v1584
    %1586 = vdwg.mxu0
    %1587 = vmatprep.subr.mxu0 %v1304
    %1588 = vmatpush1.msra.mxu0 %v1303
    %1589 = vmatprep.subr.mxu0 %v1308
    %1590 = vmatpush1.msra.mxu0 %v1307
    %1591 = vmatprep.subr.mxu0 %v1312
    %1592 = vmatpush1.msra.mxu0 %v1311
    %1593 = vmatprep.subr.mxu0 %v1316
    %1594 = vmatpush1.msra.mxu0 %v1315
    %1595 = vmatprep.subr.mxu0 %v1320
    %1596 = vmatpush1.msra.mxu0 %v1319
    %1597 = vmatprep.subr.mxu0 %v1324
    %1598 = vmatpush1.msra.mxu0 %v1323
    %1599 = vmatprep.subr.mxu0 %v1328
    %1600 = vmatpush1.msra.mxu0 %v1327
    %1601 = vmatprep.subr.mxu0 %v1332
    %1602 = vmatpush1.msra.mxu0 %v1331
    %1603 = vmatprep.subr.mxu0 0.0
    %1604 = vmatpush1.msra.mxu0 0.0
    %1605 = vmatprep.subr.mxu0 0.0
    %1606 = vmatpush1.msra.mxu0 0.0
    %1607 = vmatprep.subr.mxu0 0.0
    %1608 = vmatpush1.msra.mxu0 0.0
    %1609 = vmatprep.subr.mxu0 0.0
    %1610 = vmatpush1.msra.mxu0 0.0
    %1611 = vmatprep.subr.mxu0 0.0
    %1612 = vmatpush1.msra.mxu0 0.0
    %1613 = vmatprep.subr.mxu0 0.0
    %1614 = vmatpush1.msra.mxu0 0.0
    %1615 = vmatprep.subr.mxu0 0.0
    %1616 = vmatpush1.msra.mxu0 0.0
    %1617 = vmatprep.subr.mxu0 0.0
    %1618 = vmatpush1.msra.mxu0 0.0
    %1619 = vmatprep.subr.mxu0 0.0
    %1620 = vmatpush1.msra.mxu0 0.0
    %1621 = vmatprep.subr.mxu0 0.0
    %1622 = vmatpush1.msra.mxu0 0.0
    %1623 = vmatprep.subr.mxu0 0.0
    %1624 = vmatpush1.msra.mxu0 0.0
    %1625 = vmatprep.subr.mxu0 0.0
    %1626 = vmatpush1.msra.mxu0 0.0
    %1627 = vmatprep.subr.mxu0 0.0
    %1628 = vmatpush1.msra.mxu0 0.0
    %1629 = vmatprep.subr.mxu0 0.0
    %1630 = vmatpush1.msra.mxu0 0.0
    %1631 = vmatprep.subr.mxu0 0.0
    %1632 = vmatpush1.msra.mxu0 0.0
    %1633 = vmatprep.subr.mxu0 0.0
    %1634 = vmatpush1.msra.mxu0 0.0
    %1635 = vmatprep.subr.mxu0 0.0
    %1636 = vmatpush1.msra.mxu0 0.0
    %1637 = vmatprep.subr.mxu0 0.0
    %1638 = vmatpush1.msra.mxu0 0.0
    %1639 = vmatprep.subr.mxu0 0.0
    %1640 = vmatpush1.msra.mxu0 0.0
    %1641 = vmatprep.subr.mxu0 0.0
    %1642 = vmatpush1.msra.mxu0 0.0
    %1643 = vmatprep.subr.mxu0 0.0
    %1644 = vmatpush1.msra.mxu0 0.0
    %1645 = vmatprep.subr.mxu0 0.0
    %1646 = vmatpush1.msra.mxu0 0.0
    %1647 = vmatprep.subr.mxu0 0.0
    %1648 = vmatpush1.msra.mxu0 0.0
    %1649 = vmatprep.subr.mxu0 0.0
    %1650 = vmatpush1.msra.mxu0 0.0
    %1651 = vmatprep.mubr.f32.mxu0 0.0
    %1652 = vmatmul.mubr.f32.gmra.mrb[0].mxu0 %v1514
    %v1653 = vpop.f32.mrb[0].mxu0
    %v1654 = vadd.f32 %v1509, %v1653
    %v1655 = vpop.f32.mrb[0].mxu0
    %v1656 = vadd.f32 %v1511, %v1655
    %1657 = vdwg.mxu0
    %s1658 = scalar_lea.vmem [#allocation8], 2
    %v1659 = vld [vmem:[%s1658] ss:$4 sm:$0x3]
    %s1660 = scalar_lea.vmem [#allocation12], 512
    %v1661 = vld [vmem:[%s1660] sm:$0xff]
    %v1662 = vld [vmem:[%s1660 + $0x8] sm:$0xff]
    %v1663 = vld [vmem:[%s1660 + $0x10] sm:$0xff]
    %v1664 = vld [vmem:[%s1660 + $0x18] sm:$0xff]
    %v1665 = vld [vmem:[%s1660 + $0x20] sm:$0xff]
    %v1666 = vld [vmem:[%s1660 + $0x28] sm:$0xff]
    %v1667 = vld [vmem:[%s1660 + $0x30] sm:$0xff]
    %v1668 = vld [vmem:[%s1660 + $0x38] sm:$0xff]
    %v1669 = vld [vmem:[%s1660 + $0x40] sm:$0xff]
    %v1670 = vld [vmem:[%s1660 + $0x48] sm:$0xff]
    %v1671 = vld [vmem:[%s1660 + $0x50] sm:$0xff]
    %v1672 = vld [vmem:[%s1660 + $0x58] sm:$0xff]
    %v1673 = vld [vmem:[%s1660 + $0x60] sm:$0xff]
    %v1674 = vld [vmem:[%s1660 + $0x68] sm:$0xff]
    %v1675 = vld [vmem:[%s1660 + $0x70] sm:$0xff]
    %v1676 = vld [vmem:[%s1660 + $0x78] sm:$0xff]
    %v1677 = vld [vmem:[%s1660 + $0x80] sm:$0xff]
    %v1678 = vld [vmem:[%s1660 + $0x88] sm:$0xff]
    %v1679 = vld [vmem:[%s1660 + $0x90] sm:$0xff]
    %v1680 = vld [vmem:[%s1660 + $0x98] sm:$0xff]
    %v1681 = vld [vmem:[%s1660 + $0xa0] sm:$0xff]
    %v1682 = vld [vmem:[%s1660 + $0xa8] sm:$0xff]
    %v1683 = vld [vmem:[%s1660 + $0xb0] sm:$0xff]
    %v1684 = vld [vmem:[%s1660 + $0xb8] sm:$0xff]
    %v1685 = vld [vmem:[%s1660 + $0xc0] sm:$0xff]
    %v1686 = vld [vmem:[%s1660 + $0xc8] sm:$0xff]
    %v1687 = vld [vmem:[%s1660 + $0xd0] sm:$0xff]
    %v1688 = vld [vmem:[%s1660 + $0xd8] sm:$0xff]
    %v1689 = vld [vmem:[%s1660 + $0xe0] sm:$0xff]
    %v1690 = vld [vmem:[%s1660 + $0xe8] sm:$0xff]
    %v1691 = vld [vmem:[%s1660 + $0xf0] sm:$0xff]
    %v1692 = vld [vmem:[%s1660 + $0xf8] sm:$0xff]
    %v1694 = vsel %vm1291, %v1659, 0
    %1696 = vmatprep.subr.mxu0 %v1662
    %1697 = vmatpush1.msra.mxu0 %v1661
    %1698 = vmatprep.subr.mxu0 %v1666
    %1699 = vmatpush1.msra.mxu0 %v1665
    %1700 = vmatprep.subr.mxu0 %v1670
    %1701 = vmatpush1.msra.mxu0 %v1669
    %1702 = vmatprep.subr.mxu0 %v1674
    %1703 = vmatpush1.msra.mxu0 %v1673
    %1704 = vmatprep.subr.mxu0 %v1678
    %1705 = vmatpush1.msra.mxu0 %v1677
    %1706 = vmatprep.subr.mxu0 %v1682
    %1707 = vmatpush1.msra.mxu0 %v1681
    %1708 = vmatprep.subr.mxu0 %v1686
    %1709 = vmatpush1.msra.mxu0 %v1685
    %1710 = vmatprep.subr.mxu0 %v1690
    %1711 = vmatpush1.msra.mxu0 %v1689
    %1712 = vmatprep.subr.mxu0 0.0
    %1713 = vmatpush1.msra.mxu0 0.0
    %1714 = vmatprep.subr.mxu0 0.0
    %1715 = vmatpush1.msra.mxu0 0.0
    %1716 = vmatprep.subr.mxu0 0.0
    %1717 = vmatpush1.msra.mxu0 0.0
    %1718 = vmatprep.subr.mxu0 0.0
    %1719 = vmatpush1.msra.mxu0 0.0
    %1720 = vmatprep.subr.mxu0 0.0
    %1721 = vmatpush1.msra.mxu0 0.0
    %1722 = vmatprep.subr.mxu0 0.0
    %1723 = vmatpush1.msra.mxu0 0.0
    %1724 = vmatprep.subr.mxu0 0.0
    %1725 = vmatpush1.msra.mxu0 0.0
    %1726 = vmatprep.subr.mxu0 0.0
    %1727 = vmatpush1.msra.mxu0 0.0
    %1728 = vmatprep.subr.mxu0 0.0
    %1729 = vmatpush1.msra.mxu0 0.0
    %1730 = vmatprep.subr.mxu0 0.0
    %1731 = vmatpush1.msra.mxu0 0.0
    %1732 = vmatprep.subr.mxu0 0.0
    %1733 = vmatpush1.msra.mxu0 0.0
    %1734 = vmatprep.subr.mxu0 0.0
    %1735 = vmatpush1.msra.mxu0 0.0
    %1736 = vmatprep.subr.mxu0 0.0
    %1737 = vmatpush1.msra.mxu0 0.0
    %1738 = vmatprep.subr.mxu0 0.0
    %1739 = vmatpush1.msra.mxu0 0.0
    %1740 = vmatprep.subr.mxu0 0.0
    %1741 = vmatpush1.msra.mxu0 0.0
    %1742 = vmatprep.subr.mxu0 0.0
    %1743 = vmatpush1.msra.mxu0 0.0
    %1744 = vmatprep.subr.mxu0 0.0
    %1745 = vmatpush1.msra.mxu0 0.0
    %1746 = vmatprep.subr.mxu0 0.0
    %1747 = vmatpush1.msra.mxu0 0.0
    %1748 = vmatprep.subr.mxu0 0.0
    %1749 = vmatpush1.msra.mxu0 0.0
    %1750 = vmatprep.subr.mxu0 0.0
    %1751 = vmatpush1.msra.mxu0 0.0
    %1752 = vmatprep.subr.mxu0 0.0
    %1753 = vmatpush1.msra.mxu0 0.0
    %1754 = vmatprep.subr.mxu0 0.0
    %1755 = vmatpush1.msra.mxu0 0.0
    %1756 = vmatprep.subr.mxu0 0.0
    %1757 = vmatpush1.msra.mxu0 0.0
    %1758 = vmatprep.subr.mxu0 0.0
    %1759 = vmatpush1.msra.mxu0 0.0
    %1760 = vmatprep.mubr.f32.mxu0 0.0
    %1761 = vmatmul.mubr.f32.gmra.mrb[0].mxu0 %v1694
    %v1762 = vpop.f32.mrb[0].mxu0
    %v1763 = vadd.f32 0.0, %v1762
    %v1764 = vpop.f32.mrb[0].mxu0
    %v1765 = vadd.f32 0.0, %v1764
    %1766 = vdwg.mxu0
    %1767 = vmatprep.subr.mxu0 %v1664
    %1768 = vmatpush1.msra.mxu0 %v1663
    %1769 = vmatprep.subr.mxu0 %v1668
    %1770 = vmatpush1.msra.mxu0 %v1667
    %1771 = vmatprep.subr.mxu0 %v1672
    %1772 = vmatpush1.msra.mxu0 %v1671
    %1773 = vmatprep.subr.mxu0 %v1676
    %1774 = vmatpush1.msra.mxu0 %v1675
    %1775 = vmatprep.subr.mxu0 %v1680
    %1776 = vmatpush1.msra.mxu0 %v1679
    %1777 = vmatprep.subr.mxu0 %v1684
    %1778 = vmatpush1.msra.mxu0 %v1683
    %1779 = vmatprep.subr.mxu0 %v1688
    %1780 = vmatpush1.msra.mxu0 %v1687
    %1781 = vmatprep.subr.mxu0 %v1692
    %1782 = vmatpush1.msra.mxu0 %v1691
    %1783 = vmatprep.subr.mxu0 0.0
    %1784 = vmatpush1.msra.mxu0 0.0
    %1785 = vmatprep.subr.mxu0 0.0
    %1786 = vmatpush1.msra.mxu0 0.0
    %1787 = vmatprep.subr.mxu0 0.0
    %1788 = vmatpush1.msra.mxu0 0.0
    %1789 = vmatprep.subr.mxu0 0.0
    %1790 = vmatpush1.msra.mxu0 0.0
    %1791 = vmatprep.subr.mxu0 0.0
    %1792 = vmatpush1.msra.mxu0 0.0
    %1793 = vmatprep.subr.mxu0 0.0
    %1794 = vmatpush1.msra.mxu0 0.0
    %1795 = vmatprep.subr.mxu0 0.0
    %1796 = vmatpush1.msra.mxu0 0.0
    %1797 = vmatprep.subr.mxu0 0.0
    %1798 = vmatpush1.msra.mxu0 0.0
    %1799 = vmatprep.subr.mxu0 0.0
    %1800 = vmatpush1.msra.mxu0 0.0
    %1801 = vmatprep.subr.mxu0 0.0
    %1802 = vmatpush1.msra.mxu0 0.0
    %1803 = vmatprep.subr.mxu0 0.0
    %1804 = vmatpush1.msra.mxu0 0.0
    %1805 = vmatprep.subr.mxu0 0.0
    %1806 = vmatpush1.msra.mxu0 0.0
    %1807 = vmatprep.subr.mxu0 0.0
    %1808 = vmatpush1.msra.mxu0 0.0
    %1809 = vmatprep.subr.mxu0 0.0
    %1810 = vmatpush1.msra.mxu0 0.0
    %1811 = vmatprep.subr.mxu0 0.0
    %1812 = vmatpush1.msra.mxu0 0.0
    %1813 = vmatprep.subr.mxu0 0.0
    %1814 = vmatpush1.msra.mxu0 0.0
    %1815 = vmatprep.subr.mxu0 0.0
    %1816 = vmatpush1.msra.mxu0 0.0
    %1817 = vmatprep.subr.mxu0 0.0
    %1818 = vmatpush1.msra.mxu0 0.0
    %1819 = vmatprep.subr.mxu0 0.0
    %1820 = vmatpush1.msra.mxu0 0.0
    %1821 = vmatprep.subr.mxu0 0.0
    %1822 = vmatpush1.msra.mxu0 0.0
    %1823 = vmatprep.subr.mxu0 0.0
    %1824 = vmatpush1.msra.mxu0 0.0
    %1825 = vmatprep.subr.mxu0 0.0
    %1826 = vmatpush1.msra.mxu0 0.0
    %1827 = vmatprep.subr.mxu0 0.0
    %1828 = vmatpush1.msra.mxu0 0.0
    %1829 = vmatprep.subr.mxu0 0.0
    %1830 = vmatpush1.msra.mxu0 0.0
    %1831 = vmatprep.mubr.f32.mxu0 0.0
    %1832 = vmatmul.mubr.f32.gmra.mrb[0].mxu0 %v1694
    %v1833 = vpop.f32.mrb[0].mxu0
    %v1834 = vadd.f32 0.0, %v1833
    %v1835 = vpop.f32.mrb[0].mxu0
    %v1836 = vadd.f32 0.0, %v1835
    %1837 = vdwg.mxu0
    %v1838 = vadd.f32 %v1583, %v1763
    %v1839 = vadd.f32 %v1585, %v1765
    %v1840 = vadd.f32 %v1654, %v1834
    %v1841 = vadd.f32 %v1656, %v1836
    %s1842 = scalar_lea.vmem [#allocation8], 3
    %v1843 = vld [vmem:[%s1842] ss:$4 sm:$0x3]
    %s1844 = scalar_lea.vmem [#allocation12], 768
    %v1845 = vld [vmem:[%s1844] sm:$0xff]
    %v1846 = vld [vmem:[%s1844 + $0x8] sm:$0xff]
    %v1847 = vld [vmem:[%s1844 + $0x10] sm:$0xff]
    %v1848 = vld [vmem:[%s1844 + $0x18] sm:$0xff]
    %v1849 = vld [vmem:[%s1844 + $0x20] sm:$0xff]
    %v1850 = vld [vmem:[%s1844 + $0x28] sm:$0xff]
    %v1851 = vld [vmem:[%s1844 + $0x30] sm:$0xff]
    %v1852 = vld [vmem:[%s1844 + $0x38] sm:$0xff]
    %v1853 = vld [vmem:[%s1844 + $0x40] sm:$0xff]
    %v1854 = vld [vmem:[%s1844 + $0x48] sm:$0xff]
    %v1855 = vld [vmem:[%s1844 + $0x50] sm:$0xff]
    %v1856 = vld [vmem:[%s1844 + $0x58] sm:$0xff]
    %v1857 = vld [vmem:[%s1844 + $0x60] sm:$0xff]
    %v1858 = vld [vmem:[%s1844 + $0x68] sm:$0xff]
    %v1859 = vld [vmem:[%s1844 + $0x70] sm:$0xff]
    %v1860 = vld [vmem:[%s1844 + $0x78] sm:$0xff]
    %v1861 = vld [vmem:[%s1844 + $0x80] sm:$0xff]
    %v1862 = vld [vmem:[%s1844 + $0x88] sm:$0xff]
    %v1863 = vld [vmem:[%s1844 + $0x90] sm:$0xff]
    %v1864 = vld [vmem:[%s1844 + $0x98] sm:$0xff]
    %v1865 = vld [vmem:[%s1844 + $0xa0] sm:$0xff]
    %v1866 = vld [vmem:[%s1844 + $0xa8] sm:$0xff]
    %v1867 = vld [vmem:[%s1844 + $0xb0] sm:$0xff]
    %v1868 = vld [vmem:[%s1844 + $0xb8] sm:$0xff]
    %v1869 = vld [vmem:[%s1844 + $0xc0] sm:$0xff]
    %v1870 = vld [vmem:[%s1844 + $0xc8] sm:$0xff]
    %v1871 = vld [vmem:[%s1844 + $0xd0] sm:$0xff]
    %v1872 = vld [vmem:[%s1844 + $0xd8] sm:$0xff]
    %v1873 = vld [vmem:[%s1844 + $0xe0] sm:$0xff]
    %v1874 = vld [vmem:[%s1844 + $0xe8] sm:$0xff]
    %v1875 = vld [vmem:[%s1844 + $0xf0] sm:$0xff]
    %v1876 = vld [vmem:[%s1844 + $0xf8] sm:$0xff]
    %v1878 = vsel %vm1291, %v1843, 0
    %1880 = vmatprep.subr.mxu0 %v1846
    %1881 = vmatpush1.msra.mxu0 %v1845
    %1882 = vmatprep.subr.mxu0 %v1850
    %1883 = vmatpush1.msra.mxu0 %v1849
    %1884 = vmatprep.subr.mxu0 %v1854
    %1885 = vmatpush1.msra.mxu0 %v1853
    %1886 = vmatprep.subr.mxu0 %v1858
    %1887 = vmatpush1.msra.mxu0 %v1857
    %1888 = vmatprep.subr.mxu0 %v1862
    %1889 = vmatpush1.msra.mxu0 %v1861
    %1890 = vmatprep.subr.mxu0 %v1866
    %1891 = vmatpush1.msra.mxu0 %v1865
    %1892 = vmatprep.subr.mxu0 %v1870
    %1893 = vmatpush1.msra.mxu0 %v1869
    %1894 = vmatprep.subr.mxu0 %v1874
    %1895 = vmatpush1.msra.mxu0 %v1873
    %1896 = vmatprep.subr.mxu0 0.0
    %1897 = vmatpush1.msra.mxu0 0.0
    %1898 = vmatprep.subr.mxu0 0.0
    %1899 = vmatpush1.msra.mxu0 0.0
    %1900 = vmatprep.subr.mxu0 0.0
    %1901 = vmatpush1.msra.mxu0 0.0
    %1902 = vmatprep.subr.mxu0 0.0
    %1903 = vmatpush1.msra.mxu0 0.0
    %1904 = vmatprep.subr.mxu0 0.0
    %1905 = vmatpush1.msra.mxu0 0.0
    %1906 = vmatprep.subr.mxu0 0.0
    %1907 = vmatpush1.msra.mxu0 0.0
    %1908 = vmatprep.subr.mxu0 0.0
    %1909 = vmatpush1.msra.mxu0 0.0
    %1910 = vmatprep.subr.mxu0 0.0
    %1911 = vmatpush1.msra.mxu0 0.0
    %1912 = vmatprep.subr.mxu0 0.0
    %1913 = vmatpush1.msra.mxu0 0.0
    %1914 = vmatprep.subr.mxu0 0.0
    %1915 = vmatpush1.msra.mxu0 0.0
    %1916 = vmatprep.subr.mxu0 0.0
    %1917 = vmatpush1.msra.mxu0 0.0
    %1918 = vmatprep.subr.mxu0 0.0
    %1919 = vmatpush1.msra.mxu0 0.0
    %1920 = vmatprep.subr.mxu0 0.0
    %1921 = vmatpush1.msra.mxu0 0.0
    %1922 = vmatprep.subr.mxu0 0.0
    %1923 = vmatpush1.msra.mxu0 0.0
    %1924 = vmatprep.subr.mxu0 0.0
    %1925 = vmatpush1.msra.mxu0 0.0
    %1926 = vmatprep.subr.mxu0 0.0
    %1927 = vmatpush1.msra.mxu0 0.0
    %1928 = vmatprep.subr.mxu0 0.0
    %1929 = vmatpush1.msra.mxu0 0.0
    %1930 = vmatprep.subr.mxu0 0.0
    %1931 = vmatpush1.msra.mxu0 0.0
    %1932 = vmatprep.subr.mxu0 0.0
    %1933 = vmatpush1.msra.mxu0 0.0
    %1934 = vmatprep.subr.mxu0 0.0
    %1935 = vmatpush1.msra.mxu0 0.0
    %1936 = vmatprep.subr.mxu0 0.0
    %1937 = vmatpush1.msra.mxu0 0.0
    %1938 = vmatprep.subr.mxu0 0.0
    %1939 = vmatpush1.msra.mxu0 0.0
    %1940 = vmatprep.subr.mxu0 0.0
    %1941 = vmatpush1.msra.mxu0 0.0
    %1942 = vmatprep.subr.mxu0 0.0
    %1943 = vmatpush1.msra.mxu0 0.0
    %1944 = vmatprep.mubr.f32.mxu0 0.0
    %1945 = vmatmul.mubr.f32.gmra.mrb[0].mxu0 %v1878
    %v1946 = vpop.f32.mrb[0].mxu0
    %v1947 = vadd.f32 0.0, %v1946
    %v1948 = vpop.f32.mrb[0].mxu0
    %v1949 = vadd.f32 0.0, %v1948
    %1950 = vdwg.mxu0
    %1951 = vmatprep.subr.mxu0 %v1848
    %1952 = vmatpush1.msra.mxu0 %v1847
    %1953 = vmatprep.subr.mxu0 %v1852
    %1954 = vmatpush1.msra.mxu0 %v1851
    %1955 = vmatprep.subr.mxu0 %v1856
    %1956 = vmatpush1.msra.mxu0 %v1855
    %1957 = vmatprep.subr.mxu0 %v1860
    %1958 = vmatpush1.msra.mxu0 %v1859
    %1959 = vmatprep.subr.mxu0 %v1864
    %1960 = vmatpush1.msra.mxu0 %v1863
    %1961 = vmatprep.subr.mxu0 %v1868
    %1962 = vmatpush1.msra.mxu0 %v1867
    %1963 = vmatprep.subr.mxu0 %v1872
    %1964 = vmatpush1.msra.mxu0 %v1871
    %1965 = vmatprep.subr.mxu0 %v1876
    %1966 = vmatpush1.msra.mxu0 %v1875
    %1967 = vmatprep.subr.mxu0 0.0
    %1968 = vmatpush1.msra.mxu0 0.0
    %1969 = vmatprep.subr.mxu0 0.0
    %1970 = vmatpush1.msra.mxu0 0.0
    %1971 = vmatprep.subr.mxu0 0.0
    %1972 = vmatpush1.msra.mxu0 0.0
    %1973 = vmatprep.subr.mxu0 0.0
    %1974 = vmatpush1.msra.mxu0 0.0
    %1975 = vmatprep.subr.mxu0 0.0
    %1976 = vmatpush1.msra.mxu0 0.0
    %1977 = vmatprep.subr.mxu0 0.0
    %1978 = vmatpush1.msra.mxu0 0.0
    %1979 = vmatprep.subr.mxu0 0.0
    %1980 = vmatpush1.msra.mxu0 0.0
    %1981 = vmatprep.subr.mxu0 0.0
    %1982 = vmatpush1.msra.mxu0 0.0
    %1983 = vmatprep.subr.mxu0 0.0
    %1984 = vmatpush1.msra.mxu0 0.0
    %1985 = vmatprep.subr.mxu0 0.0
    %1986 = vmatpush1.msra.mxu0 0.0
    %1987 = vmatprep.subr.mxu0 0.0
    %1988 = vmatpush1.msra.mxu0 0.0
    %1989 = vmatprep.subr.mxu0 0.0
    %1990 = vmatpush1.msra.mxu0 0.0
    %1991 = vmatprep.subr.mxu0 0.0
    %1992 = vmatpush1.msra.mxu0 0.0
    %1993 = vmatprep.subr.mxu0 0.0
    %1994 = vmatpush1.msra.mxu0 0.0
    %1995 = vmatprep.subr.mxu0 0.0
    %1996 = vmatpush1.msra.mxu0 0.0
    %1997 = vmatprep.subr.mxu0 0.0
    %1998 = vmatpush1.msra.mxu0 0.0
    %1999 = vmatprep.subr.mxu0 0.0
    %2000 = vmatpush1.msra.mxu0 0.0
    %2001 = vmatprep.subr.mxu0 0.0
    %2002 = vmatpush1.msra.mxu0 0.0
    %2003 = vmatprep.subr.mxu0 0.0
    %2004 = vmatpush1.msra.mxu0 0.0
    %2005 = vmatprep.subr.mxu0 0.0
    %2006 = vmatpush1.msra.mxu0 0.0
    %2007 = vmatprep.subr.mxu0 0.0
    %2008 = vmatpush1.msra.mxu0 0.0
    %2009 = vmatprep.subr.mxu0 0.0
    %2010 = vmatpush1.msra.mxu0 0.0
    %2011 = vmatprep.subr.mxu0 0.0
    %2012 = vmatpush1.msra.mxu0 0.0
    %2013 = vmatprep.subr.mxu0 0.0
    %2014 = vmatpush1.msra.mxu0 0.0
    %2015 = vmatprep.mubr.f32.mxu0 0.0
    %2016 = vmatmul.mubr.f32.gmra.mrb[0].mxu0 %v1878
    %v2017 = vpop.f32.mrb[0].mxu0
    %v2018 = vadd.f32 0.0, %v2017
    %v2019 = vpop.f32.mrb[0].mxu0
    %v2020 = vadd.f32 0.0, %v2019
    %2021 = vdwg.mxu0
    %v2022 = vadd.f32 %v1838, %v1947
    %v2023 = vadd.f32 %v1839, %v1949
    %v2024 = vadd.f32 %v1840, %v2018
    %v2025 = vadd.f32 %v1841, %v2020
    %v2026 = vld [vmem:[%s8] sm:$0xf]
    %v2028 = vlaneseq
    %v2029 = vshrl.u32 %v2028, 7
    %v2030 = vsub.s32 0, %v2029
    %v2031 = vrot.slane %v2026, %v2030
    %v2032 = vlaneseq
    %v2033 = vshrl.u32 %v2032, 7
    %v2034 = vsub.s32 1, %v2033
    %v2035 = vrot.slane %v2026, %v2034
    %v2036 = vlaneseq
    %v2037 = vshrl.u32 %v2036, 7
    %v2038 = vsub.s32 2, %v2037
    %v2039 = vrot.slane %v2026, %v2038
    %v2040 = vlaneseq
    %v2041 = vshrl.u32 %v2040, 7
    %v2042 = vsub.s32 3, %v2041
    %v2043 = vrot.slane %v2026, %v2042
    %v2048 = vadd.f32 %v2022, %v2031
    %v2049 = vadd.f32 %v2023, %v2035
    %v2050 = vadd.f32 %v2024, %v2039
    %v2051 = vadd.f32 %v2025, %v2043
    %v2052 = vmax.f32 %v2048, 0.0
    %v2053 = vmax.f32 %v2049, 0.0
    %v2054 = vmax.f32 %v2050, 0.0
    %v2055 = vmax.f32 %v2051, 0.0
    %v2056 = vld [vmem:[#allocation14] sm:$0xff]
    %v2057 = vld [vmem:[#allocation14 + $0x8] sm:$0xff]
    %v2058 = vld [vmem:[#allocation14 + $0x10] sm:$0xff]
    %v2059 = vld [vmem:[#allocation14 + $0x18] sm:$0xff]
    %v2060 = vld [vmem:[#allocation14 + $0x20] sm:$0xff]
    %v2061 = vld [vmem:[#allocation14 + $0x28] sm:$0xff]
    %v2062 = vld [vmem:[#allocation14 + $0x30] sm:$0xff]
    %v2063 = vld [vmem:[#allocation14 + $0x38] sm:$0xff]
    %v2064 = vld [vmem:[#allocation14 + $0x40] sm:$0xff]
    %v2065 = vld [vmem:[#allocation14 + $0x48] sm:$0xff]
    %v2066 = vld [vmem:[#allocation14 + $0x50] sm:$0xff]
    %v2067 = vld [vmem:[#allocation14 + $0x58] sm:$0xff]
    %v2068 = vld [vmem:[#allocation14 + $0x60] sm:$0xff]
    %v2069 = vld [vmem:[#allocation14 + $0x68] sm:$0xff]
    %v2070 = vld [vmem:[#allocation14 + $0x70] sm:$0xff]
    %v2071 = vld [vmem:[#allocation14 + $0x78] sm:$0xff]
    %v2072 = vld [vmem:[#allocation14 + $0x80] sm:$0xff]
    %v2073 = vld [vmem:[#allocation14 + $0x88] sm:$0xff]
    %v2074 = vld [vmem:[#allocation14 + $0x90] sm:$0xff]
    %v2075 = vld [vmem:[#allocation14 + $0x98] sm:$0xff]
    %v2076 = vld [vmem:[#allocation14 + $0xa0] sm:$0xff]
    %v2077 = vld [vmem:[#allocation14 + $0xa8] sm:$0xff]
    %v2078 = vld [vmem:[#allocation14 + $0xb0] sm:$0xff]
    %v2079 = vld [vmem:[#allocation14 + $0xb8] sm:$0xff]
    %v2080 = vld [vmem:[#allocation14 + $0xc0] sm:$0xff]
    %v2081 = vld [vmem:[#allocation14 + $0xc8] sm:$0xff]
    %v2082 = vld [vmem:[#allocation14 + $0xd0] sm:$0xff]
    %v2083 = vld [vmem:[#allocation14 + $0xd8] sm:$0xff]
    %v2084 = vld [vmem:[#allocation14 + $0xe0] sm:$0xff]
    %v2085 = vld [vmem:[#allocation14 + $0xe8] sm:$0xff]
    %v2086 = vld [vmem:[#allocation14 + $0xf0] sm:$0xff]
    %v2087 = vld [vmem:[#allocation14 + $0xf8] sm:$0xff]
    %v2088 = vld [vmem:[#allocation14 + $0x100] sm:$0xff]
    %v2089 = vld [vmem:[#allocation14 + $0x108] sm:$0xff]
    %v2090 = vld [vmem:[#allocation14 + $0x110] sm:$0xff]
    %v2091 = vld [vmem:[#allocation14 + $0x118] sm:$0xff]
    %v2092 = vld [vmem:[#allocation14 + $0x120] sm:$0xff]
    %v2093 = vld [vmem:[#allocation14 + $0x128] sm:$0xff]
    %v2094 = vld [vmem:[#allocation14 + $0x130] sm:$0xff]
    %v2095 = vld [vmem:[#allocation14 + $0x138] sm:$0xff]
    %v2096 = vld [vmem:[#allocation14 + $0x140] sm:$0xff]
    %v2097 = vld [vmem:[#allocation14 + $0x148] sm:$0xff]
    %v2098 = vld [vmem:[#allocation14 + $0x150] sm:$0xff]
    %v2099 = vld [vmem:[#allocation14 + $0x158] sm:$0xff]
    %v2100 = vld [vmem:[#allocation14 + $0x160] sm:$0xff]
    %v2101 = vld [vmem:[#allocation14 + $0x168] sm:$0xff]
    %v2102 = vld [vmem:[#allocation14 + $0x170] sm:$0xff]
    %v2103 = vld [vmem:[#allocation14 + $0x178] sm:$0xff]
    %v2104 = vld [vmem:[#allocation14 + $0x180] sm:$0xff]
    %v2105 = vld [vmem:[#allocation14 + $0x188] sm:$0xff]
    %v2106 = vld [vmem:[#allocation14 + $0x190] sm:$0xff]
    %v2107 = vld [vmem:[#allocation14 + $0x198] sm:$0xff]
    %v2108 = vld [vmem:[#allocation14 + $0x1a0] sm:$0xff]
    %v2109 = vld [vmem:[#allocation14 + $0x1a8] sm:$0xff]
    %v2110 = vld [vmem:[#allocation14 + $0x1b0] sm:$0xff]
    %v2111 = vld [vmem:[#allocation14 + $0x1b8] sm:$0xff]
    %v2112 = vld [vmem:[#allocation14 + $0x1c0] sm:$0xff]
    %v2113 = vld [vmem:[#allocation14 + $0x1c8] sm:$0xff]
    %v2114 = vld [vmem:[#allocation14 + $0x1d0] sm:$0xff]
    %v2115 = vld [vmem:[#allocation14 + $0x1d8] sm:$0xff]
    %v2116 = vld [vmem:[#allocation14 + $0x1e0] sm:$0xff]
    %v2117 = vld [vmem:[#allocation14 + $0x1e8] sm:$0xff]
    %v2118 = vld [vmem:[#allocation14 + $0x1f0] sm:$0xff]
    %v2119 = vld [vmem:[#allocation14 + $0x1f8] sm:$0xff]
    %v2120 = vld [vmem:[%s10] sm:$0x1]
    %v2122 = vlaneseq
    %v2123 = vshrl.u32 %v2122, 7
    %v2124 = vsub.s32 0, %v2123
    %v2125 = vrot.slane %v2120, %v2124
    %2127 = vmatprep.subr.mxu0 0.0
    %2128 = vmatpush1.msra.mxu0 %v2056
    %2129 = vmatprep.subr.mxu0 0.0
    %2130 = vmatpush1.msra.mxu0 %v2057
    %2131 = vmatprep.subr.mxu0 0.0
    %2132 = vmatpush1.msra.mxu0 %v2058
    %2133 = vmatprep.subr.mxu0 0.0
    %2134 = vmatpush1.msra.mxu0 %v2059
    %2135 = vmatprep.subr.mxu0 0.0
    %2136 = vmatpush1.msra.mxu0 %v2060
    %2137 = vmatprep.subr.mxu0 0.0
    %2138 = vmatpush1.msra.mxu0 %v2061
    %2139 = vmatprep.subr.mxu0 0.0
    %2140 = vmatpush1.msra.mxu0 %v2062
    %2141 = vmatprep.subr.mxu0 0.0
    %2142 = vmatpush1.msra.mxu0 %v2063
    %2143 = vmatprep.subr.mxu0 0.0
    %2144 = vmatpush1.msra.mxu0 %v2064
    %2145 = vmatprep.subr.mxu0 0.0
    %2146 = vmatpush1.msra.mxu0 %v2065
    %2147 = vmatprep.subr.mxu0 0.0
    %2148 = vmatpush1.msra.mxu0 %v2066
    %2149 = vmatprep.subr.mxu0 0.0
    %2150 = vmatpush1.msra.mxu0 %v2067
    %2151 = vmatprep.subr.mxu0 0.0
    %2152 = vmatpush1.msra.mxu0 %v2068
    %2153 = vmatprep.subr.mxu0 0.0
    %2154 = vmatpush1.msra.mxu0 %v2069
    %2155 = vmatprep.subr.mxu0 0.0
    %2156 = vmatpush1.msra.mxu0 %v2070
    %2157 = vmatprep.subr.mxu0 0.0
    %2158 = vmatpush1.msra.mxu0 %v2071
    %2159 = vmatprep.subr.mxu0 0.0
    %2160 = vmatpush1.msra.mxu0 %v2072
    %2161 = vmatprep.subr.mxu0 0.0
    %2162 = vmatpush1.msra.mxu0 %v2073
    %2163 = vmatprep.subr.mxu0 0.0
    %2164 = vmatpush1.msra.mxu0 %v2074
    %2165 = vmatprep.subr.mxu0 0.0
    %2166 = vmatpush1.msra.mxu0 %v2075
    %2167 = vmatprep.subr.mxu0 0.0
    %2168 = vmatpush1.msra.mxu0 %v2076
    %2169 = vmatprep.subr.mxu0 0.0
    %2170 = vmatpush1.msra.mxu0 %v2077
    %2171 = vmatprep.subr.mxu0 0.0
    %2172 = vmatpush1.msra.mxu0 %v2078
    %2173 = vmatprep.subr.mxu0 0.0
    %2174 = vmatpush1.msra.mxu0 %v2079
    %2175 = vmatprep.subr.mxu0 0.0
    %2176 = vmatpush1.msra.mxu0 %v2080
    %2177 = vmatprep.subr.mxu0 0.0
    %2178 = vmatpush1.msra.mxu0 %v2081
    %2179 = vmatprep.subr.mxu0 0.0
    %2180 = vmatpush1.msra.mxu0 %v2082
    %2181 = vmatprep.subr.mxu0 0.0
    %2182 = vmatpush1.msra.mxu0 %v2083
    %2183 = vmatprep.subr.mxu0 0.0
    %2184 = vmatpush1.msra.mxu0 %v2084
    %2185 = vmatprep.subr.mxu0 0.0
    %2186 = vmatpush1.msra.mxu0 %v2085
    %2187 = vmatprep.subr.mxu0 0.0
    %2188 = vmatpush1.msra.mxu0 %v2086
    %2189 = vmatprep.subr.mxu0 0.0
    %2190 = vmatpush1.msra.mxu0 %v2087
    %2191 = vmatprep.mubr.f32.mxu0 %v2053
    %2192 = vmatmul.mubr.f32.gmra.mrb[0].mxu0 %v2052
    %v2193 = vpop.f32.mrb[0].mxu0
    %v2194 = vadd.f32 %v2125, %v2193
    %v2195 = vpop.f32.mrb[0].mxu0
    %2196 = vdwg.mxu0
    %2197 = vmatprep.subr.mxu0 0.0
    %2198 = vmatpush1.msra.mxu0 %v2088
    %2199 = vmatprep.subr.mxu0 0.0
    %2200 = vmatpush1.msra.mxu0 %v2089
    %2201 = vmatprep.subr.mxu0 0.0
    %2202 = vmatpush1.msra.mxu0 %v2090
    %2203 = vmatprep.subr.mxu0 0.0
    %2204 = vmatpush1.msra.mxu0 %v2091
    %2205 = vmatprep.subr.mxu0 0.0
    %2206 = vmatpush1.msra.mxu0 %v2092
    %2207 = vmatprep.subr.mxu0 0.0
    %2208 = vmatpush1.msra.mxu0 %v2093
    %2209 = vmatprep.subr.mxu0 0.0
    %2210 = vmatpush1.msra.mxu0 %v2094
    %2211 = vmatprep.subr.mxu0 0.0
    %2212 = vmatpush1.msra.mxu0 %v2095
    %2213 = vmatprep.subr.mxu0 0.0
    %2214 = vmatpush1.msra.mxu0 %v2096
    %2215 = vmatprep.subr.mxu0 0.0
    %2216 = vmatpush1.msra.mxu0 %v2097
    %2217 = vmatprep.subr.mxu0 0.0
    %2218 = vmatpush1.msra.mxu0 %v2098
    %2219 = vmatprep.subr.mxu0 0.0
    %2220 = vmatpush1.msra.mxu0 %v2099
    %2221 = vmatprep.subr.mxu0 0.0
    %2222 = vmatpush1.msra.mxu0 %v2100
    %2223 = vmatprep.subr.mxu0 0.0
    %2224 = vmatpush1.msra.mxu0 %v2101
    %2225 = vmatprep.subr.mxu0 0.0
    %2226 = vmatpush1.msra.mxu0 %v2102
    %2227 = vmatprep.subr.mxu0 0.0
    %2228 = vmatpush1.msra.mxu0 %v2103
    %2229 = vmatprep.subr.mxu0 0.0
    %2230 = vmatpush1.msra.mxu0 %v2104
    %2231 = vmatprep.subr.mxu0 0.0
    %2232 = vmatpush1.msra.mxu0 %v2105
    %2233 = vmatprep.subr.mxu0 0.0
    %2234 = vmatpush1.msra.mxu0 %v2106
    %2235 = vmatprep.subr.mxu0 0.0
    %2236 = vmatpush1.msra.mxu0 %v2107
    %2237 = vmatprep.subr.mxu0 0.0
    %2238 = vmatpush1.msra.mxu0 %v2108
    %2239 = vmatprep.subr.mxu0 0.0
    %2240 = vmatpush1.msra.mxu0 %v2109
    %2241 = vmatprep.subr.mxu0 0.0
    %2242 = vmatpush1.msra.mxu0 %v2110
    %2243 = vmatprep.subr.mxu0 0.0
    %2244 = vmatpush1.msra.mxu0 %v2111
    %2245 = vmatprep.subr.mxu0 0.0
    %2246 = vmatpush1.msra.mxu0 %v2112
    %2247 = vmatprep.subr.mxu0 0.0
    %2248 = vmatpush1.msra.mxu0 %v2113
    %2249 = vmatprep.subr.mxu0 0.0
    %2250 = vmatpush1.msra.mxu0 %v2114
    %2251 = vmatprep.subr.mxu0 0.0
    %2252 = vmatpush1.msra.mxu0 %v2115
    %2253 = vmatprep.subr.mxu0 0.0
    %2254 = vmatpush1.msra.mxu0 %v2116
    %2255 = vmatprep.subr.mxu0 0.0
    %2256 = vmatpush1.msra.mxu0 %v2117
    %2257 = vmatprep.subr.mxu0 0.0
    %2258 = vmatpush1.msra.mxu0 %v2118
    %2259 = vmatprep.subr.mxu0 0.0
    %2260 = vmatpush1.msra.mxu0 %v2119
    %2261 = vmatprep.mubr.f32.mxu0 %v2055
    %2262 = vmatmul.mubr.f32.gmra.mrb[0].mxu0 %v2054
    %v2263 = vpop.f32.mrb[0].mxu0
    %v2264 = vadd.f32 %v2194, %v2263
    %v2265 = vpop.f32.mrb[0].mxu0
    %2266 = vdwg.mxu0
    %v2267 = vmax.f32 %v2264, 0.0
    %v2268 = vld [vmem:[#allocation15] sm:$0xff]
    %v2269 = vld [vmem:[#allocation15 + $0x8] sm:$0xff]
    %v2270 = vld [vmem:[#allocation15 + $0x10] sm:$0xff]
    %v2271 = vld [vmem:[#allocation15 + $0x18] sm:$0xff]
    %v2272 = vld [vmem:[#allocation15 + $0x20] sm:$0xff]
    %v2273 = vld [vmem:[#allocation15 + $0x28] sm:$0xff]
    %v2274 = vld [vmem:[#allocation15 + $0x30] sm:$0xff]
    %v2275 = vld [vmem:[#allocation15 + $0x38] sm:$0xff]
    %v2276 = vld [vmem:[#allocation15 + $0x40] sm:$0xff]
    %v2277 = vld [vmem:[#allocation15 + $0x48] sm:$0xff]
    %v2278 = vld [vmem:[#allocation15 + $0x50] sm:$0xff]
    %v2279 = vld [vmem:[#allocation15 + $0x58] sm:$0xff]
    %v2280 = vld [vmem:[#allocation15 + $0x60] sm:$0xff]
    %v2281 = vld [vmem:[#allocation15 + $0x68] sm:$0xff]
    %v2282 = vld [vmem:[#allocation15 + $0x70] sm:$0xff]
    %v2283 = vld [vmem:[#allocation15 + $0x78] sm:$0xff]
    %v2284 = vld [vmem:[%s12] sm:$0x1]
    %v2286 = vlaneseq
    %v2287 = vshrl.u32 %v2286, 7
    %v2288 = vsub.s32 0, %v2287
    %v2289 = vrot.slane %v2284, %v2288
    %2291 = vmatprep.subr.mxu0 0.0
    %2292 = vmatpush1.msra.mxu0 %v2268
    %2293 = vmatprep.subr.mxu0 0.0
    %2294 = vmatpush1.msra.mxu0 %v2269
    %2295 = vmatprep.subr.mxu0 0.0
    %2296 = vmatpush1.msra.mxu0 %v2270
    %2297 = vmatprep.subr.mxu0 0.0
    %2298 = vmatpush1.msra.mxu0 %v2271
    %2299 = vmatprep.subr.mxu0 0.0
    %2300 = vmatpush1.msra.mxu0 %v2272
    %2301 = vmatprep.subr.mxu0 0.0
    %2302 = vmatpush1.msra.mxu0 %v2273
    %2303 = vmatprep.subr.mxu0 0.0
    %2304 = vmatpush1.msra.mxu0 %v2274
    %2305 = vmatprep.subr.mxu0 0.0
    %2306 = vmatpush1.msra.mxu0 %v2275
    %2307 = vmatprep.subr.mxu0 0.0
    %2308 = vmatpush1.msra.mxu0 %v2276
    %2309 = vmatprep.subr.mxu0 0.0
    %2310 = vmatpush1.msra.mxu0 %v2277
    %2311 = vmatprep.subr.mxu0 0.0
    %2312 = vmatpush1.msra.mxu0 %v2278
    %2313 = vmatprep.subr.mxu0 0.0
    %2314 = vmatpush1.msra.mxu0 %v2279
    %2315 = vmatprep.subr.mxu0 0.0
    %2316 = vmatpush1.msra.mxu0 %v2280
    %2317 = vmatprep.subr.mxu0 0.0
    %2318 = vmatpush1.msra.mxu0 %v2281
    %2319 = vmatprep.subr.mxu0 0.0
    %2320 = vmatpush1.msra.mxu0 %v2282
    %2321 = vmatprep.subr.mxu0 0.0
    %2322 = vmatpush1.msra.mxu0 %v2283
    %2323 = vmatprep.subr.mxu0 0.0
    %2324 = vmatpush1.msra.mxu0 0.0
    %2325 = vmatprep.subr.mxu0 0.0
    %2326 = vmatpush1.msra.mxu0 0.0
    %2327 = vmatprep.subr.mxu0 0.0
    %2328 = vmatpush1.msra.mxu0 0.0
    %2329 = vmatprep.subr.mxu0 0.0
    %2330 = vmatpush1.msra.mxu0 0.0
    %2331 = vmatprep.subr.mxu0 0.0
    %2332 = vmatpush1.msra.mxu0 0.0
    %2333 = vmatprep.subr.mxu0 0.0
    %2334 = vmatpush1.msra.mxu0 0.0
    %2335 = vmatprep.subr.mxu0 0.0
    %2336 = vmatpush1.msra.mxu0 0.0
    %2337 = vmatprep.subr.mxu0 0.0
    %2338 = vmatpush1.msra.mxu0 0.0
    %2339 = vmatprep.subr.mxu0 0.0
    %2340 = vmatpush1.msra.mxu0 0.0
    %2341 = vmatprep.subr.mxu0 0.0
    %2342 = vmatpush1.msra.mxu0 0.0
    %2343 = vmatprep.subr.mxu0 0.0
    %2344 = vmatpush1.msra.mxu0 0.0
    %2345 = vmatprep.subr.mxu0 0.0
    %2346 = vmatpush1.msra.mxu0 0.0
    %2347 = vmatprep.subr.mxu0 0.0
    %2348 = vmatpush1.msra.mxu0 0.0
    %2349 = vmatprep.subr.mxu0 0.0
    %2350 = vmatpush1.msra.mxu0 0.0
    %2351 = vmatprep.subr.mxu0 0.0
    %2352 = vmatpush1.msra.mxu0 0.0
    %2353 = vmatprep.subr.mxu0 0.0
    %2354 = vmatpush1.msra.mxu0 0.0
    %2355 = vmatprep.mubr.f32.mxu0 0.0
    %2356 = vmatmul.mubr.f32.gmra.mrb[0].mxu0 %v2267
    %v2357 = vpop.f32.mrb[0].mxu0
    %v2358 = vadd.f32 %v2289, %v2357
    %v2359 = vpop.f32.mrb[0].mxu0
    %2360 = vdwg.mxu0
    %v2361 = vlaneseq
    %v2362 = vand.u32 %v2361, 127
    %vm2363 = vcmp.lt.s32.totalorder %v2362, 10
    %v2364 = vsel %vm2363, %v2358, -1e+30
    %vm2365 = vcmask 1041408
    %v2366 = vsel %vm2365, %v2364, -inf
    %2367 = vmax.xlane.f32.xlu0 %v2366
    %v2368 = vpop.xlane.xlu0 %2367
    %v2369 = vsub.f32 %v2364, %v2368
    %v2370 = vmul.f32 %v2369, 1.442695
    %v2371 = vpow.pop %v2370
    %v2372 = vsel %vm2365, %v2371, 0.0
    %2373 = vadd.xlane.f32.xlu0 %v2372
    %v2374 = vpop.xlane.xlu0 %2373
    %v2375 = vrcp.pop %v2374
    %v2376 = vmul.f32 %v2371, %v2375
    %2377 = vst [vmem:[#allocation17] sm:$0x3] %v2376
    // Predicated region
    $region70: #{tpu_custom_call.1} parent=1 // pred_check
      _
    $region71: #{tpu_custom_call.1} parent=1 // pred_check_branch
      %2379 = sbr.rel (0) target = $region73
    $region72: #{tpu_custom_call.1} parent=1 // pred_region
      %s2381 = ssub.s32 32, 32
      %2382 = vsyncadd [#allocation11], %s2381
      %s2384 = sshll.u32 [#allocation17], 4
      %s2385 = int_to_ptr.vmem [resolvable:$true] %s2384
      %2387 = dma.vmem_to_hbm [thread:$0]  %s2385, 32, %s13, [#allocation11]
    $region73: #{tpu_custom_call.1} parent=1 // pred_fallthru
      _
    // Predicated region
    $region74: #{tpu_custom_call.1} parent=1 // pred_check
      _
    $region75: #{tpu_custom_call.1} parent=1 // pred_check_branch
      %2389 = sbr.rel (0) target = $region77
    $region76: #{tpu_custom_call.1} parent=1 // pred_region
      %2390 = dma.done [#allocation11], 32
    $region77: #{tpu_custom_call.1} parent=1 // pred_fallthru
      _
    %2391 = vsyncpa [#allocation10], 1
    %2392 = vsyncpa [#allocation13], 1
    %2393 = vsyncpa [#allocation16], 1
    %2394 = vsyncpa [#allocation11], 1

</llo_original>
